<compile_context>
chip_gen: v7x
topology: tpu7x:2x2x1
jax: 0.10.0
libtpu: 0.0.40
codegen_flags: <defaults>
</compile_context>

<pallas_src>
import functools

import jax
import jax.numpy as jnp
from jax.experimental import pallas as pl
from jax.experimental.pallas import tpu as pltpu


def encoder_layer_kernel(
    src_ref,                        # (b_tile, S, D) f32
    qw_ref, kw_ref, vw_ref,         # (D, D) bf16   (1/sqrt(hd) folded into qw)
    qb_ref, kb_ref, vb_ref,         # (1, D) f32    (1/sqrt(hd) folded into qb)
    ow_ref, ob_ref,                 # (D, D) bf16, (1, D) f32
    w1_ref, b1_ref,                 # (D, F) bf16, (1, F) f32
    w2_ref, b2_ref,                 # (F, D) bf16, (1, D) f32
    g1_ref, be1_ref,                # (1, D) f32 layernorm1 gamma/beta
    g2_ref, be2_ref,                # (1, D) f32 layernorm2 gamma/beta
    out_ref,                        # (b_tile, S, D) f32
    attn_ref,                       # (b_tile, S, S) f32 head-averaged weights
    *, nhead, eps, b_tile, seq,
):
    D = src_ref.shape[-1]
    hd = D // nhead
    M = b_tile * seq

    x = src_ref[...].reshape(M, D)                       # (M, D) f32
    x_bf = x.astype(jnp.bfloat16)

    # --- in-projection (q, k, v); 1/sqrt(hd) already folded into qw/qb ---
    q = jnp.dot(x_bf, qw_ref[...], preferred_element_type=jnp.float32) + qb_ref[...]
    k = jnp.dot(x_bf, kw_ref[...], preferred_element_type=jnp.float32) + kb_ref[...]
    v = jnp.dot(x_bf, vw_ref[...], preferred_element_type=jnp.float32) + vb_ref[...]

    ow = ow_ref[...]                                      # (D, D) bf16

    # --- attention: static loop over heads, batched over batch via einsum ---
    attn_out = jnp.zeros((M, D), jnp.float32)
    w_sum = jnp.zeros((b_tile, seq, seq), jnp.float32)
    for h in range(nhead):
        cols = slice(h * hd, (h + 1) * hd)
        qh = q[:, cols].reshape(b_tile, seq, hd).astype(jnp.bfloat16)
        kh = k[:, cols].reshape(b_tile, seq, hd).astype(jnp.bfloat16)
        vh = v[:, cols].reshape(b_tile, seq, hd).astype(jnp.bfloat16)

        s = jnp.einsum("bqd,bkd->bqk", qh, kh,
                       preferred_element_type=jnp.float32)           # (b, S, S)
        s = s - jnp.max(s, axis=-1, keepdims=True)
        e = jnp.exp(s)
        p = e * pl.reciprocal(jnp.sum(e, axis=-1, keepdims=True), approx=True)
        w_sum = w_sum + p

        ctx = jnp.einsum("bqk,bkd->bqd", p.astype(jnp.bfloat16), vh,
                         preferred_element_type=jnp.float32)         # (b, S, hd)
        # Head-accumulated output projection (no concat of head outputs).
        attn_out = attn_out + jnp.dot(
            ctx.reshape(M, hd).astype(jnp.bfloat16), ow[cols, :],
            preferred_element_type=jnp.float32)

    # PyTorch MultiheadAttention returns weights averaged over heads.
    attn_ref[...] = w_sum * (1.0 / nhead)

    attn_out = attn_out + ob_ref[...]

    # --- residual + layernorm1 (dropout1 == identity) ---
    y = x + attn_out
    mu = jnp.mean(y, axis=-1, keepdims=True)
    var = jnp.mean((y - mu) ** 2, axis=-1, keepdims=True)
    y = (y - mu) * jax.lax.rsqrt(var + eps) * g1_ref[...] + be1_ref[...]

    # --- feed-forward: linear2(relu(linear1(y))) (dropout == identity) ---
    h1 = jnp.dot(y.astype(jnp.bfloat16), w1_ref[...],
                 preferred_element_type=jnp.float32) + b1_ref[...]
    h1 = jnp.maximum(h1, 0.0)                                        # relu
    h2 = jnp.dot(h1.astype(jnp.bfloat16), w2_ref[...],
                 preferred_element_type=jnp.float32) + b2_ref[...]

    # --- residual + layernorm2 (dropout2 == identity) ---
    z = y + h2
    mu2 = jnp.mean(z, axis=-1, keepdims=True)
    var2 = jnp.mean((z - mu2) ** 2, axis=-1, keepdims=True)
    z = (z - mu2) * jax.lax.rsqrt(var2 + eps) * g2_ref[...] + be2_ref[...]

    out_ref[...] = z.reshape(b_tile, seq, D)


def _choose_b_tile(batch, seq):
    """Largest divisor of `batch` whose merged row count b_tile*seq <= 512."""
    best = 1
    for d in range(1, batch + 1):
        if batch % d == 0 and d * seq <= 512:
            best = d
    return best


def transformer_encoder_layer(src_sbd, params, *, nhead, eps=1e-5):
    """src_sbd: (seq, batch, d_model) float32 -- PyTorch convention.
    Returns (out (seq, batch, d_model), attn_weights (batch, seq, seq))."""
    x = jnp.transpose(src_sbd, (1, 0, 2)).astype(jnp.float32)   # (B, S, D)
    B, S, D = x.shape
    hd = D // nhead
    scale = 1.0 / (hd ** 0.5)

    in_w = params["in_proj_weight"]              # (3D, D)
    in_b = params["in_proj_bias"]                # (3D,)
    # Weights pre-transposed to (in, out); MXU operands in bf16, biases f32.
    # 1/sqrt(head_dim) is folded into the q projection here (done once).
    qw = (in_w[:D] * scale).T.astype(jnp.bfloat16)
    kw = in_w[D:2 * D].T.astype(jnp.bfloat16)
    vw = in_w[2 * D:].T.astype(jnp.bfloat16)
    qb = (in_b[:D] * scale)[None, :].astype(jnp.float32)
    kb = in_b[D:2 * D][None, :].astype(jnp.float32)
    vb = in_b[2 * D:][None, :].astype(jnp.float32)
    ow = params["out_proj_weight"].T.astype(jnp.bfloat16)
    ob = params["out_proj_bias"][None, :].astype(jnp.float32)
    w1 = params["w1"].T.astype(jnp.bfloat16)                     # (D, F)
    b1 = params["b1"][None, :].astype(jnp.float32)               # (1, F)
    w2 = params["w2"].T.astype(jnp.bfloat16)                     # (F, D)
    b2 = params["b2"][None, :].astype(jnp.float32)               # (1, D)
    g1, be1 = params["ln1_w"][None, :], params["ln1_b"][None, :]
    g2, be2 = params["ln2_w"][None, :], params["ln2_b"][None, :]

    b_tile = _choose_b_tile(B, S)
    grid = (B // b_tile,)

    full = lambda a: pl.BlockSpec(a.shape, lambda i: (0,) * a.ndim)

    kernel = functools.partial(encoder_layer_kernel, nhead=nhead, eps=eps,
                               b_tile=b_tile, seq=S)
    out, attn = pl.pallas_call(
        kernel,
        out_shape=(
            jax.ShapeDtypeStruct((B, S, D), jnp.float32),
            jax.ShapeDtypeStruct((B, S, S), jnp.float32),
        ),
        grid=grid,
        in_specs=[
            pl.BlockSpec((b_tile, S, D), lambda i: (i, 0, 0)),
            full(qw), full(kw), full(vw),
            full(qb), full(kb), full(vb),
            full(ow), full(ob),
            full(w1), full(b1),
            full(w2), full(b2),
            full(g1), full(be1),
            full(g2), full(be2),
        ],
        out_specs=(
            pl.BlockSpec((b_tile, S, D), lambda i: (i, 0, 0)),
            pl.BlockSpec((b_tile, S, S), lambda i: (i, 0, 0)),
        ),
        compiler_params=pltpu.CompilerParams(
            dimension_semantics=("parallel",),
            vmem_limit_bytes=64 * 1024 * 1024,
        ),
    )(x, qw, kw, vw, qb, kb, vb, ow, ob, w1, b1, w2, b2, g1, be1, g2, be2)

    # Back to PyTorch (seq, batch, d_model); attn weights stay (batch, S, S).
    return jnp.transpose(out, (1, 0, 2)), attn


def reference_forward(src_sbd, params, *, nhead, eps=1e-5):
    """Pure-JAX f32 reference mirroring nn.TransformerEncoderLayer (eval)."""
    x = jnp.transpose(src_sbd, (1, 0, 2)).astype(jnp.float32)   # (B, S, D)
    B, S, D = x.shape
    hd = D // nhead
    in_w, in_b = params["in_proj_weight"], params["in_proj_bias"]
    q = x @ in_w[:D].T + in_b[:D]
    k = x @ in_w[D:2 * D].T + in_b[D:2 * D]
    v = x @ in_w[2 * D:].T + in_b[2 * D:]
    q = q * (hd ** -0.5)
    qh = q.reshape(B, S, nhead, hd).transpose(0, 2, 1, 3)
    kh = k.reshape(B, S, nhead, hd).transpose(0, 2, 1, 3)
    vh = v.reshape(B, S, nhead, hd).transpose(0, 2, 1, 3)
    scores = jnp.einsum("bhqd,bhkd->bhqk", qh, kh)
    p = jax.nn.softmax(scores, axis=-1)
    attn_w = jnp.mean(p, axis=1)                                 # (B, S, S)
    o = jnp.einsum("bhqk,bhkd->bhqd", p, vh).transpose(0, 2, 1, 3).reshape(B, S, D)
    o = o @ params["out_proj_weight"].T + params["out_proj_bias"]

    def ln(t, g, b):
        mu = jnp.mean(t, -1, keepdims=True)
        var = jnp.mean((t - mu) ** 2, -1, keepdims=True)
        return (t - mu) * jax.lax.rsqrt(var + eps) * g + b

    y = ln(x + o, params["ln1_w"], params["ln1_b"])
    h = jnp.maximum(y @ params["w1"].T + params["b1"], 0.0)
    h = h @ params["w2"].T + params["b2"]
    z = ln(y + h, params["ln2_w"], params["ln2_b"])
    return jnp.transpose(z, (1, 0, 2)), attn_w


def init_params(key, d_model, nhead, dim_feedforward):
    ks = jax.random.split(key, 8)
    return {
        "in_proj_weight": 0.1 * jax.random.normal(ks[0], (3 * d_model, d_model), jnp.float32),
        "in_proj_bias": 0.05 * jax.random.normal(ks[1], (3 * d_model,), jnp.float32),
        "out_proj_weight": 0.1 * jax.random.normal(ks[2], (d_model, d_model), jnp.float32),
        "out_proj_bias": 0.05 * jax.random.normal(ks[3], (d_model,), jnp.float32),
        "w1": 0.1 * jax.random.normal(ks[4], (dim_feedforward, d_model), jnp.float32),
        "b1": 0.05 * jax.random.normal(ks[5], (dim_feedforward,), jnp.float32),
        "w2": 0.1 * jax.random.normal(ks[6], (d_model, dim_feedforward), jnp.float32),
        "b2": 0.05 * jax.random.normal(ks[7], (d_model,), jnp.float32),
        "ln1_w": jnp.ones((d_model,), jnp.float32),
        "ln1_b": jnp.zeros((d_model,), jnp.float32),
        "ln2_w": jnp.ones((d_model,), jnp.float32),
        "ln2_b": jnp.zeros((d_model,), jnp.float32),
    }


if __name__ == "__main__":
    d_model, nhead, dim_feedforward = 32, 4, 64
    seq, batch = 8, 2

    key = jax.random.PRNGKey(0)
    k_src, k_par = jax.random.split(key)
    src = jax.random.normal(k_src, (seq, batch, d_model), jnp.float32)   # (S, B, D)
    params = init_params(k_par, d_model, nhead, dim_feedforward)

    out, attn_w = transformer_encoder_layer(src, params, nhead=nhead)
    out = jax.block_until_ready(out)
    attn_w = jax.block_until_ready(attn_w)

    ref_out, ref_w = reference_forward(src, params, nhead=nhead)
    assert out.shape == (seq, batch, d_model)
    assert attn_w.shape == (batch, seq, seq)
    assert jnp.allclose(out, ref_out, rtol=2e-2, atol=2e-2)
    assert jnp.allclose(attn_w, ref_w, rtol=2e-2, atol=2e-2)

    print("KERNEL_OK")
</pallas_src>

<mosaic_0001>
module attributes {stable_mosaic.version = 11 : i64} {
  func.func @encoder_layer_kernel(%arg0: i32, %arg1: memref<2x8x32xf32, #tpu.memory_space<vmem>>, %arg2: memref<32x32xbf16, #tpu.memory_space<vmem>>, %arg3: memref<32x32xbf16, #tpu.memory_space<vmem>>, %arg4: memref<32x32xbf16, #tpu.memory_space<vmem>>, %arg5: memref<1x32xf32, #tpu.memory_space<vmem>>, %arg6: memref<1x32xf32, #tpu.memory_space<vmem>>, %arg7: memref<1x32xf32, #tpu.memory_space<vmem>>, %arg8: memref<32x32xbf16, #tpu.memory_space<vmem>>, %arg9: memref<1x32xf32, #tpu.memory_space<vmem>>, %arg10: memref<32x64xbf16, #tpu.memory_space<vmem>>, %arg11: memref<1x64xf32, #tpu.memory_space<vmem>>, %arg12: memref<64x32xbf16, #tpu.memory_space<vmem>>, %arg13: memref<1x32xf32, #tpu.memory_space<vmem>>, %arg14: memref<1x32xf32, #tpu.memory_space<vmem>>, %arg15: memref<1x32xf32, #tpu.memory_space<vmem>>, %arg16: memref<1x32xf32, #tpu.memory_space<vmem>>, %arg17: memref<1x32xf32, #tpu.memory_space<vmem>>, %arg18: memref<2x8x32xf32, #tpu.memory_space<vmem>>, %arg19: memref<2x8x8xf32, #tpu.memory_space<vmem>>) attributes {dimension_semantics = [#tpu.dimension_semantics<parallel>], iteration_bounds = array<i64: 1>, scalar_prefetch = 0 : i64, scratch_operands = 0 : i64, tpu.core_type = #tpu.core_type<tc>, window_params = [{transform_indices = @transform_0, window_bounds = array<i64: 2, 8, 32>}, {pipeline_mode = #tpu.pipeline_mode<synchronous>, transform_indices = @transform_1, window_bounds = array<i64: 32, 32>}, {pipeline_mode = #tpu.pipeline_mode<synchronous>, transform_indices = @transform_2, window_bounds = array<i64: 32, 32>}, {pipeline_mode = #tpu.pipeline_mode<synchronous>, transform_indices = @transform_3, window_bounds = array<i64: 32, 32>}, {pipeline_mode = #tpu.pipeline_mode<synchronous>, transform_indices = @transform_4, window_bounds = array<i64: 1, 32>}, {pipeline_mode = #tpu.pipeline_mode<synchronous>, transform_indices = @transform_5, window_bounds = array<i64: 1, 32>}, {pipeline_mode = #tpu.pipeline_mode<synchronous>, transform_indices = @transform_6, window_bounds = array<i64: 1, 32>}, {pipeline_mode = #tpu.pipeline_mode<synchronous>, transform_indices = @transform_7, window_bounds = array<i64: 32, 32>}, {pipeline_mode = #tpu.pipeline_mode<synchronous>, transform_indices = @transform_8, window_bounds = array<i64: 1, 32>}, {pipeline_mode = #tpu.pipeline_mode<synchronous>, transform_indices = @transform_9, window_bounds = array<i64: 32, 64>}, {pipeline_mode = #tpu.pipeline_mode<synchronous>, transform_indices = @transform_10, window_bounds = array<i64: 1, 64>}, {pipeline_mode = #tpu.pipeline_mode<synchronous>, transform_indices = @transform_11, window_bounds = array<i64: 64, 32>}, {pipeline_mode = #tpu.pipeline_mode<synchronous>, transform_indices = @transform_12, window_bounds = array<i64: 1, 32>}, {pipeline_mode = #tpu.pipeline_mode<synchronous>, transform_indices = @transform_13, window_bounds = array<i64: 1, 32>}, {pipeline_mode = #tpu.pipeline_mode<synchronous>, transform_indices = @transform_14, window_bounds = array<i64: 1, 32>}, {pipeline_mode = #tpu.pipeline_mode<synchronous>, transform_indices = @transform_15, window_bounds = array<i64: 1, 32>}, {pipeline_mode = #tpu.pipeline_mode<synchronous>, transform_indices = @transform_16, window_bounds = array<i64: 1, 32>}, {transform_indices = @transform_17, window_bounds = array<i64: 2, 8, 32>}, {transform_indices = @transform_18, window_bounds = array<i64: 2, 8, 8>}]} {
    %c0 = arith.constant 0 : index
    %c0_0 = arith.constant 0 : index
    %c0_1 = arith.constant 0 : index
    %0 = vector.load %arg1[%c0, %c0_0, %c0_1] : memref<2x8x32xf32, #tpu.memory_space<vmem>>, vector<2x8x32xf32>
    %1 = vector.shape_cast %0 : vector<2x8x32xf32> to vector<16x32xf32>
    %2 = arith.truncf %1 : vector<16x32xf32> to vector<16x32xbf16>
    %c0_2 = arith.constant 0 : index
    %c0_3 = arith.constant 0 : index
    %3 = vector.load %arg2[%c0_2, %c0_3] : memref<32x32xbf16, #tpu.memory_space<vmem>>, vector<32x32xbf16>
    %cst = arith.constant dense<0.000000e+00> : vector<16x32xf32>
    %4 = tpu.matmul %2, %3, %cst {dimension_numbers = #tpu.dot_dimension_numbers<[1], [0], [0], [1], [0, 0, 1, 1], [], []>} : vector<16x32xbf16>, vector<32x32xbf16>, vector<16x32xf32> -> vector<16x32xf32>
    %c0_4 = arith.constant 0 : index
    %c0_5 = arith.constant 0 : index
    %5 = vector.load %arg5[%c0_4, %c0_5] : memref<1x32xf32, #tpu.memory_space<vmem>>, vector<1x32xf32>
    %6 = vector.broadcast %5 : vector<1x32xf32> to vector<16x32xf32>
    %7 = arith.addf %4, %6 : vector<16x32xf32>
    %c0_6 = arith.constant 0 : index
    %c0_7 = arith.constant 0 : index
    %8 = vector.load %arg3[%c0_6, %c0_7] : memref<32x32xbf16, #tpu.memory_space<vmem>>, vector<32x32xbf16>
    %cst_8 = arith.constant dense<0.000000e+00> : vector<16x32xf32>
    %9 = tpu.matmul %2, %8, %cst_8 {dimension_numbers = #tpu.dot_dimension_numbers<[1], [0], [0], [1], [0, 0, 1, 1], [], []>} : vector<16x32xbf16>, vector<32x32xbf16>, vector<16x32xf32> -> vector<16x32xf32>
    %c0_9 = arith.constant 0 : index
    %c0_10 = arith.constant 0 : index
    %10 = vector.load %arg6[%c0_9, %c0_10] : memref<1x32xf32, #tpu.memory_space<vmem>>, vector<1x32xf32>
    %11 = vector.broadcast %10 : vector<1x32xf32> to vector<16x32xf32>
    %12 = arith.addf %9, %11 : vector<16x32xf32>
    %c0_11 = arith.constant 0 : index
    %c0_12 = arith.constant 0 : index
    %13 = vector.load %arg4[%c0_11, %c0_12] : memref<32x32xbf16, #tpu.memory_space<vmem>>, vector<32x32xbf16>
    %cst_13 = arith.constant dense<0.000000e+00> : vector<16x32xf32>
    %14 = tpu.matmul %2, %13, %cst_13 {dimension_numbers = #tpu.dot_dimension_numbers<[1], [0], [0], [1], [0, 0, 1, 1], [], []>} : vector<16x32xbf16>, vector<32x32xbf16>, vector<16x32xf32> -> vector<16x32xf32>
    %c0_14 = arith.constant 0 : index
    %c0_15 = arith.constant 0 : index
    %15 = vector.load %arg7[%c0_14, %c0_15] : memref<1x32xf32, #tpu.memory_space<vmem>>, vector<1x32xf32>
    %16 = vector.broadcast %15 : vector<1x32xf32> to vector<16x32xf32>
    %17 = arith.addf %14, %16 : vector<16x32xf32>
    %c0_16 = arith.constant 0 : index
    %c0_17 = arith.constant 0 : index
    %18 = vector.load %arg8[%c0_16, %c0_17] : memref<32x32xbf16, #tpu.memory_space<vmem>>, vector<32x32xbf16>
    %cst_18 = arith.constant 0.000000e+00 : f32
    %19 = vector.broadcast %cst_18 : f32 to vector<16x32xf32>
    %cst_19 = arith.constant 0.000000e+00 : f32
    %20 = vector.broadcast %cst_19 : f32 to vector<2x8x8xf32>
    %21 = vector.extract_strided_slice %7 {offsets = [0, 0], sizes = [16, 8], strides = [1, 1]} : vector<16x32xf32> to vector<16x8xf32>
    %22 = vector.shape_cast %21 : vector<16x8xf32> to vector<2x8x8xf32>
    %23 = arith.truncf %22 : vector<2x8x8xf32> to vector<2x8x8xbf16>
    %24 = vector.extract_strided_slice %12 {offsets = [0, 0], sizes = [16, 8], strides = [1, 1]} : vector<16x32xf32> to vector<16x8xf32>
    %25 = vector.shape_cast %24 : vector<16x8xf32> to vector<2x8x8xf32>
    %26 = arith.truncf %25 : vector<2x8x8xf32> to vector<2x8x8xbf16>
    %27 = vector.extract_strided_slice %17 {offsets = [0, 0], sizes = [16, 8], strides = [1, 1]} : vector<16x32xf32> to vector<16x8xf32>
    %28 = vector.shape_cast %27 : vector<16x8xf32> to vector<2x8x8xf32>
    %29 = arith.truncf %28 : vector<2x8x8xf32> to vector<2x8x8xbf16>
    "tpu.trace_start"() <{level = 10 : i32, message = "bqd,bkd->bqk"}> : () -> ()
    %cst_20 = arith.constant dense<0.000000e+00> : vector<2x8x8xf32>
    %30 = tpu.matmul %23, %26, %cst_20 {dimension_numbers = #tpu.dot_dimension_numbers<[2], [2], [1], [1], [0, 0, 0, 1, 1, 1], [0], [0]>} : vector<2x8x8xbf16>, vector<2x8x8xbf16>, vector<2x8x8xf32> -> vector<2x8x8xf32>
    "tpu.trace_stop"() : () -> ()
    %cst_21 = arith.constant dense<0xFF800000> : vector<2x8xf32>
    %31 = vector.multi_reduction <maximumf>, %30, %cst_21 [2] : vector<2x8x8xf32> to vector<2x8xf32>
    %32 = vector.shape_cast %31 : vector<2x8xf32> to vector<2x8x1xf32>
    %33 = vector.broadcast %32 : vector<2x8x1xf32> to vector<2x8x8xf32>
    %34 = arith.subf %30, %33 : vector<2x8x8xf32>
    %35 = math.exp %34 : vector<2x8x8xf32>
    %cst_22 = arith.constant dense<0.000000e+00> : vector<2x8xf32>
    %36 = vector.multi_reduction <add>, %35, %cst_22 [2] : vector<2x8x8xf32> to vector<2x8xf32>
    %37 = vector.shape_cast %36 : vector<2x8xf32> to vector<2x8x1xf32>
    %38 = tpu.reciprocal %37 {approx = true} : vector<2x8x1xf32> -> vector<2x8x1xf32>
    %39 = vector.broadcast %38 : vector<2x8x1xf32> to vector<2x8x8xf32>
    %40 = arith.mulf %35, %39 : vector<2x8x8xf32>
    %41 = arith.addf %20, %40 : vector<2x8x8xf32>
    %42 = arith.truncf %40 : vector<2x8x8xf32> to vector<2x8x8xbf16>
    "tpu.trace_start"() <{level = 10 : i32, message = "bqk,bkd->bqd"}> : () -> ()
    %cst_23 = arith.constant dense<0.000000e+00> : vector<2x8x8xf32>
    %43 = tpu.matmul %42, %29, %cst_23 {dimension_numbers = #tpu.dot_dimension_numbers<[2], [1], [1], [2], [0, 0, 0, 1, 1, 2], [0], [0]>} : vector<2x8x8xbf16>, vector<2x8x8xbf16>, vector<2x8x8xf32> -> vector<2x8x8xf32>
    "tpu.trace_stop"() : () -> ()
    %44 = vector.shape_cast %43 : vector<2x8x8xf32> to vector<16x8xf32>
    %45 = arith.truncf %44 : vector<16x8xf32> to vector<16x8xbf16>
    %46 = vector.extract_strided_slice %18 {offsets = [0, 0], sizes = [8, 32], strides = [1, 1]} : vector<32x32xbf16> to vector<8x32xbf16>
    %cst_24 = arith.constant dense<0.000000e+00> : vector<16x32xf32>
    %47 = tpu.matmul %45, %46, %cst_24 {dimension_numbers = #tpu.dot_dimension_numbers<[1], [0], [0], [1], [0, 0, 1, 1], [], []>} : vector<16x8xbf16>, vector<8x32xbf16>, vector<16x32xf32> -> vector<16x32xf32>
    %48 = arith.addf %19, %47 : vector<16x32xf32>
    %49 = vector.extract_strided_slice %7 {offsets = [0, 8], sizes = [16, 8], strides = [1, 1]} : vector<16x32xf32> to vector<16x8xf32>
    %50 = vector.shape_cast %49 : vector<16x8xf32> to vector<2x8x8xf32>
    %51 = arith.truncf %50 : vector<2x8x8xf32> to vector<2x8x8xbf16>
    %52 = vector.extract_strided_slice %12 {offsets = [0, 8], sizes = [16, 8], strides = [1, 1]} : vector<16x32xf32> to vector<16x8xf32>
    %53 = vector.shape_cast %52 : vector<16x8xf32> to vector<2x8x8xf32>
    %54 = arith.truncf %53 : vector<2x8x8xf32> to vector<2x8x8xbf16>
    %55 = vector.extract_strided_slice %17 {offsets = [0, 8], sizes = [16, 8], strides = [1, 1]} : vector<16x32xf32> to vector<16x8xf32>
    %56 = vector.shape_cast %55 : vector<16x8xf32> to vector<2x8x8xf32>
    %57 = arith.truncf %56 : vector<2x8x8xf32> to vector<2x8x8xbf16>
    "tpu.trace_start"() <{level = 10 : i32, message = "bqd,bkd->bqk"}> : () -> ()
    %cst_25 = arith.constant dense<0.000000e+00> : vector<2x8x8xf32>
    %58 = tpu.matmul %51, %54, %cst_25 {dimension_numbers = #tpu.dot_dimension_numbers<[2], [2], [1], [1], [0, 0, 0, 1, 1, 1], [0], [0]>} : vector<2x8x8xbf16>, vector<2x8x8xbf16>, vector<2x8x8xf32> -> vector<2x8x8xf32>
    "tpu.trace_stop"() : () -> ()
    %cst_26 = arith.constant dense<0xFF800000> : vector<2x8xf32>
    %59 = vector.multi_reduction <maximumf>, %58, %cst_26 [2] : vector<2x8x8xf32> to vector<2x8xf32>
    %60 = vector.shape_cast %59 : vector<2x8xf32> to vector<2x8x1xf32>
    %61 = vector.broadcast %60 : vector<2x8x1xf32> to vector<2x8x8xf32>
    %62 = arith.subf %58, %61 : vector<2x8x8xf32>
    %63 = math.exp %62 : vector<2x8x8xf32>
    %cst_27 = arith.constant dense<0.000000e+00> : vector<2x8xf32>
    %64 = vector.multi_reduction <add>, %63, %cst_27 [2] : vector<2x8x8xf32> to vector<2x8xf32>
    %65 = vector.shape_cast %64 : vector<2x8xf32> to vector<2x8x1xf32>
    %66 = tpu.reciprocal %65 {approx = true} : vector<2x8x1xf32> -> vector<2x8x1xf32>
    %67 = vector.broadcast %66 : vector<2x8x1xf32> to vector<2x8x8xf32>
    %68 = arith.mulf %63, %67 : vector<2x8x8xf32>
    %69 = arith.addf %41, %68 : vector<2x8x8xf32>
    %70 = arith.truncf %68 : vector<2x8x8xf32> to vector<2x8x8xbf16>
    "tpu.trace_start"() <{level = 10 : i32, message = "bqk,bkd->bqd"}> : () -> ()
    %cst_28 = arith.constant dense<0.000000e+00> : vector<2x8x8xf32>
    %71 = tpu.matmul %70, %57, %cst_28 {dimension_numbers = #tpu.dot_dimension_numbers<[2], [1], [1], [2], [0, 0, 0, 1, 1, 2], [0], [0]>} : vector<2x8x8xbf16>, vector<2x8x8xbf16>, vector<2x8x8xf32> -> vector<2x8x8xf32>
    "tpu.trace_stop"() : () -> ()
    %72 = vector.shape_cast %71 : vector<2x8x8xf32> to vector<16x8xf32>
    %73 = arith.truncf %72 : vector<16x8xf32> to vector<16x8xbf16>
    %74 = vector.extract_strided_slice %18 {offsets = [8, 0], sizes = [8, 32], strides = [1, 1]} : vector<32x32xbf16> to vector<8x32xbf16>
    %cst_29 = arith.constant dense<0.000000e+00> : vector<16x32xf32>
    %75 = tpu.matmul %73, %74, %cst_29 {dimension_numbers = #tpu.dot_dimension_numbers<[1], [0], [0], [1], [0, 0, 1, 1], [], []>} : vector<16x8xbf16>, vector<8x32xbf16>, vector<16x32xf32> -> vector<16x32xf32>
    %76 = arith.addf %48, %75 : vector<16x32xf32>
    %77 = vector.extract_strided_slice %7 {offsets = [0, 16], sizes = [16, 8], strides = [1, 1]} : vector<16x32xf32> to vector<16x8xf32>
    %78 = vector.shape_cast %77 : vector<16x8xf32> to vector<2x8x8xf32>
    %79 = arith.truncf %78 : vector<2x8x8xf32> to vector<2x8x8xbf16>
    %80 = vector.extract_strided_slice %12 {offsets = [0, 16], sizes = [16, 8], strides = [1, 1]} : vector<16x32xf32> to vector<16x8xf32>
    %81 = vector.shape_cast %80 : vector<16x8xf32> to vector<2x8x8xf32>
    %82 = arith.truncf %81 : vector<2x8x8xf32> to vector<2x8x8xbf16>
    %83 = vector.extract_strided_slice %17 {offsets = [0, 16], sizes = [16, 8], strides = [1, 1]} : vector<16x32xf32> to vector<16x8xf32>
    %84 = vector.shape_cast %83 : vector<16x8xf32> to vector<2x8x8xf32>
    %85 = arith.truncf %84 : vector<2x8x8xf32> to vector<2x8x8xbf16>
    "tpu.trace_start"() <{level = 10 : i32, message = "bqd,bkd->bqk"}> : () -> ()
    %cst_30 = arith.constant dense<0.000000e+00> : vector<2x8x8xf32>
    %86 = tpu.matmul %79, %82, %cst_30 {dimension_numbers = #tpu.dot_dimension_numbers<[2], [2], [1], [1], [0, 0, 0, 1, 1, 1], [0], [0]>} : vector<2x8x8xbf16>, vector<2x8x8xbf16>, vector<2x8x8xf32> -> vector<2x8x8xf32>
    "tpu.trace_stop"() : () -> ()
    %cst_31 = arith.constant dense<0xFF800000> : vector<2x8xf32>
    %87 = vector.multi_reduction <maximumf>, %86, %cst_31 [2] : vector<2x8x8xf32> to vector<2x8xf32>
    %88 = vector.shape_cast %87 : vector<2x8xf32> to vector<2x8x1xf32>
    %89 = vector.broadcast %88 : vector<2x8x1xf32> to vector<2x8x8xf32>
    %90 = arith.subf %86, %89 : vector<2x8x8xf32>
    %91 = math.exp %90 : vector<2x8x8xf32>
    %cst_32 = arith.constant dense<0.000000e+00> : vector<2x8xf32>
    %92 = vector.multi_reduction <add>, %91, %cst_32 [2] : vector<2x8x8xf32> to vector<2x8xf32>
    %93 = vector.shape_cast %92 : vector<2x8xf32> to vector<2x8x1xf32>
    %94 = tpu.reciprocal %93 {approx = true} : vector<2x8x1xf32> -> vector<2x8x1xf32>
    %95 = vector.broadcast %94 : vector<2x8x1xf32> to vector<2x8x8xf32>
    %96 = arith.mulf %91, %95 : vector<2x8x8xf32>
    %97 = arith.addf %69, %96 : vector<2x8x8xf32>
    %98 = arith.truncf %96 : vector<2x8x8xf32> to vector<2x8x8xbf16>
    "tpu.trace_start"() <{level = 10 : i32, message = "bqk,bkd->bqd"}> : () -> ()
    %cst_33 = arith.constant dense<0.000000e+00> : vector<2x8x8xf32>
    %99 = tpu.matmul %98, %85, %cst_33 {dimension_numbers = #tpu.dot_dimension_numbers<[2], [1], [1], [2], [0, 0, 0, 1, 1, 2], [0], [0]>} : vector<2x8x8xbf16>, vector<2x8x8xbf16>, vector<2x8x8xf32> -> vector<2x8x8xf32>
    "tpu.trace_stop"() : () -> ()
    %100 = vector.shape_cast %99 : vector<2x8x8xf32> to vector<16x8xf32>
    %101 = arith.truncf %100 : vector<16x8xf32> to vector<16x8xbf16>
    %102 = vector.extract_strided_slice %18 {offsets = [16, 0], sizes = [8, 32], strides = [1, 1]} : vector<32x32xbf16> to vector<8x32xbf16>
    %cst_34 = arith.constant dense<0.000000e+00> : vector<16x32xf32>
    %103 = tpu.matmul %101, %102, %cst_34 {dimension_numbers = #tpu.dot_dimension_numbers<[1], [0], [0], [1], [0, 0, 1, 1], [], []>} : vector<16x8xbf16>, vector<8x32xbf16>, vector<16x32xf32> -> vector<16x32xf32>
    %104 = arith.addf %76, %103 : vector<16x32xf32>
    %105 = vector.extract_strided_slice %7 {offsets = [0, 24], sizes = [16, 8], strides = [1, 1]} : vector<16x32xf32> to vector<16x8xf32>
    %106 = vector.shape_cast %105 : vector<16x8xf32> to vector<2x8x8xf32>
    %107 = arith.truncf %106 : vector<2x8x8xf32> to vector<2x8x8xbf16>
    %108 = vector.extract_strided_slice %12 {offsets = [0, 24], sizes = [16, 8], strides = [1, 1]} : vector<16x32xf32> to vector<16x8xf32>
    %109 = vector.shape_cast %108 : vector<16x8xf32> to vector<2x8x8xf32>
    %110 = arith.truncf %109 : vector<2x8x8xf32> to vector<2x8x8xbf16>
    %111 = vector.extract_strided_slice %17 {offsets = [0, 24], sizes = [16, 8], strides = [1, 1]} : vector<16x32xf32> to vector<16x8xf32>
    %112 = vector.shape_cast %111 : vector<16x8xf32> to vector<2x8x8xf32>
    %113 = arith.truncf %112 : vector<2x8x8xf32> to vector<2x8x8xbf16>
    "tpu.trace_start"() <{level = 10 : i32, message = "bqd,bkd->bqk"}> : () -> ()
    %cst_35 = arith.constant dense<0.000000e+00> : vector<2x8x8xf32>
    %114 = tpu.matmul %107, %110, %cst_35 {dimension_numbers = #tpu.dot_dimension_numbers<[2], [2], [1], [1], [0, 0, 0, 1, 1, 1], [0], [0]>} : vector<2x8x8xbf16>, vector<2x8x8xbf16>, vector<2x8x8xf32> -> vector<2x8x8xf32>
    "tpu.trace_stop"() : () -> ()
    %cst_36 = arith.constant dense<0xFF800000> : vector<2x8xf32>
    %115 = vector.multi_reduction <maximumf>, %114, %cst_36 [2] : vector<2x8x8xf32> to vector<2x8xf32>
    %116 = vector.shape_cast %115 : vector<2x8xf32> to vector<2x8x1xf32>
    %117 = vector.broadcast %116 : vector<2x8x1xf32> to vector<2x8x8xf32>
    %118 = arith.subf %114, %117 : vector<2x8x8xf32>
    %119 = math.exp %118 : vector<2x8x8xf32>
    %cst_37 = arith.constant dense<0.000000e+00> : vector<2x8xf32>
    %120 = vector.multi_reduction <add>, %119, %cst_37 [2] : vector<2x8x8xf32> to vector<2x8xf32>
    %121 = vector.shape_cast %120 : vector<2x8xf32> to vector<2x8x1xf32>
    %122 = tpu.reciprocal %121 {approx = true} : vector<2x8x1xf32> -> vector<2x8x1xf32>
    %123 = vector.broadcast %122 : vector<2x8x1xf32> to vector<2x8x8xf32>
    %124 = arith.mulf %119, %123 : vector<2x8x8xf32>
    %125 = arith.addf %97, %124 : vector<2x8x8xf32>
    %126 = arith.truncf %124 : vector<2x8x8xf32> to vector<2x8x8xbf16>
    "tpu.trace_start"() <{level = 10 : i32, message = "bqk,bkd->bqd"}> : () -> ()
    %cst_38 = arith.constant dense<0.000000e+00> : vector<2x8x8xf32>
    %127 = tpu.matmul %126, %113, %cst_38 {dimension_numbers = #tpu.dot_dimension_numbers<[2], [1], [1], [2], [0, 0, 0, 1, 1, 2], [0], [0]>} : vector<2x8x8xbf16>, vector<2x8x8xbf16>, vector<2x8x8xf32> -> vector<2x8x8xf32>
    "tpu.trace_stop"() : () -> ()
    %128 = vector.shape_cast %127 : vector<2x8x8xf32> to vector<16x8xf32>
    %129 = arith.truncf %128 : vector<16x8xf32> to vector<16x8xbf16>
    %130 = vector.extract_strided_slice %18 {offsets = [24, 0], sizes = [8, 32], strides = [1, 1]} : vector<32x32xbf16> to vector<8x32xbf16>
    %cst_39 = arith.constant dense<0.000000e+00> : vector<16x32xf32>
    %131 = tpu.matmul %129, %130, %cst_39 {dimension_numbers = #tpu.dot_dimension_numbers<[1], [0], [0], [1], [0, 0, 1, 1], [], []>} : vector<16x8xbf16>, vector<8x32xbf16>, vector<16x32xf32> -> vector<16x32xf32>
    %132 = arith.addf %104, %131 : vector<16x32xf32>
    %cst_40 = arith.constant 2.500000e-01 : f32
    %133 = vector.broadcast %cst_40 : f32 to vector<2x8x8xf32>
    %134 = arith.mulf %125, %133 : vector<2x8x8xf32>
    %c0_41 = arith.constant 0 : index
    %c0_42 = arith.constant 0 : index
    %c0_43 = arith.constant 0 : index
    %135 = vector.load %arg19[%c0_41, %c0_42, %c0_43] : memref<2x8x8xf32, #tpu.memory_space<vmem>>, vector<2x8x8xf32>
    tpu.vector_store %arg19[%c0_41, %c0_42, %c0_43], %134 {strides = array<i32>} : memref<2x8x8xf32, #tpu.memory_space<vmem>>, vector<2x8x8xf32>,
    %c0_44 = arith.constant 0 : index
    %c0_45 = arith.constant 0 : index
    %136 = vector.load %arg9[%c0_44, %c0_45] : memref<1x32xf32, #tpu.memory_space<vmem>>, vector<1x32xf32>
    %137 = vector.broadcast %136 : vector<1x32xf32> to vector<16x32xf32>
    %138 = arith.addf %132, %137 : vector<16x32xf32>
    %139 = arith.addf %1, %138 : vector<16x32xf32>
    %cst_46 = arith.constant dense<0.000000e+00> : vector<16xf32>
    %140 = vector.multi_reduction <add>, %139, %cst_46 [1] : vector<16x32xf32> to vector<16xf32>
    %141 = vector.shape_cast %140 : vector<16xf32> to vector<16x1xf32>
    %cst_47 = arith.constant 3.200000e+01 : f32
    %142 = vector.broadcast %cst_47 : f32 to vector<16x1xf32>
    %143 = arith.divf %141, %142 : vector<16x1xf32>
    %144 = vector.broadcast %143 : vector<16x1xf32> to vector<16x32xf32>
    %145 = arith.subf %139, %144 : vector<16x32xf32>
    %146 = arith.mulf %145, %145 : vector<16x32xf32>
    %cst_48 = arith.constant dense<0.000000e+00> : vector<16xf32>
    %147 = vector.multi_reduction <add>, %146, %cst_48 [1] : vector<16x32xf32> to vector<16xf32>
    %148 = vector.shape_cast %147 : vector<16xf32> to vector<16x1xf32>
    %cst_49 = arith.constant 3.200000e+01 : f32
    %149 = vector.broadcast %cst_49 : f32 to vector<16x1xf32>
    %150 = arith.divf %148, %149 : vector<16x1xf32>
    %151 = vector.broadcast %143 : vector<16x1xf32> to vector<16x32xf32>
    %152 = arith.subf %139, %151 : vector<16x32xf32>
    %cst_50 = arith.constant 9.99999974E-6 : f32
    %153 = vector.broadcast %cst_50 : f32 to vector<16x1xf32>
    %154 = arith.addf %150, %153 : vector<16x1xf32>
    %155 = math.rsqrt %154 : vector<16x1xf32>
    %156 = vector.broadcast %155 : vector<16x1xf32> to vector<16x32xf32>
    %157 = arith.mulf %152, %156 : vector<16x32xf32>
    %c0_51 = arith.constant 0 : index
    %c0_52 = arith.constant 0 : index
    %158 = vector.load %arg14[%c0_51, %c0_52] : memref<1x32xf32, #tpu.memory_space<vmem>>, vector<1x32xf32>
    %159 = vector.broadcast %158 : vector<1x32xf32> to vector<16x32xf32>
    %160 = arith.mulf %157, %159 : vector<16x32xf32>
    %c0_53 = arith.constant 0 : index
    %c0_54 = arith.constant 0 : index
    %161 = vector.load %arg15[%c0_53, %c0_54] : memref<1x32xf32, #tpu.memory_space<vmem>>, vector<1x32xf32>
    %162 = vector.broadcast %161 : vector<1x32xf32> to vector<16x32xf32>
    %163 = arith.addf %160, %162 : vector<16x32xf32>
    %164 = arith.truncf %163 : vector<16x32xf32> to vector<16x32xbf16>
    %c0_55 = arith.constant 0 : index
    %c0_56 = arith.constant 0 : index
    %165 = vector.load %arg10[%c0_55, %c0_56] : memref<32x64xbf16, #tpu.memory_space<vmem>>, vector<32x64xbf16>
    %cst_57 = arith.constant dense<0.000000e+00> : vector<16x64xf32>
    %166 = tpu.matmul %164, %165, %cst_57 {dimension_numbers = #tpu.dot_dimension_numbers<[1], [0], [0], [1], [0, 0, 1, 1], [], []>} : vector<16x32xbf16>, vector<32x64xbf16>, vector<16x64xf32> -> vector<16x64xf32>
    %c0_58 = arith.constant 0 : index
    %c0_59 = arith.constant 0 : index
    %167 = vector.load %arg11[%c0_58, %c0_59] : memref<1x64xf32, #tpu.memory_space<vmem>>, vector<1x64xf32>
    %168 = vector.broadcast %167 : vector<1x64xf32> to vector<16x64xf32>
    %169 = arith.addf %166, %168 : vector<16x64xf32>
    %cst_60 = arith.constant 0.000000e+00 : f32
    %170 = vector.broadcast %cst_60 : f32 to vector<16x64xf32>
    %171 = arith.maximumf %169, %170 : vector<16x64xf32>
    %172 = arith.truncf %171 : vector<16x64xf32> to vector<16x64xbf16>
    %c0_61 = arith.constant 0 : index
    %c0_62 = arith.constant 0 : index
    %173 = vector.load %arg12[%c0_61, %c0_62] : memref<64x32xbf16, #tpu.memory_space<vmem>>, vector<64x32xbf16>
    %cst_63 = arith.constant dense<0.000000e+00> : vector<16x32xf32>
    %174 = tpu.matmul %172, %173, %cst_63 {dimension_numbers = #tpu.dot_dimension_numbers<[1], [0], [0], [1], [0, 0, 1, 1], [], []>} : vector<16x64xbf16>, vector<64x32xbf16>, vector<16x32xf32> -> vector<16x32xf32>
    %c0_64 = arith.constant 0 : index
    %c0_65 = arith.constant 0 : index
    %175 = vector.load %arg13[%c0_64, %c0_65] : memref<1x32xf32, #tpu.memory_space<vmem>>, vector<1x32xf32>
    %176 = vector.broadcast %175 : vector<1x32xf32> to vector<16x32xf32>
    %177 = arith.addf %174, %176 : vector<16x32xf32>
    %178 = arith.addf %163, %177 : vector<16x32xf32>
    %cst_66 = arith.constant dense<0.000000e+00> : vector<16xf32>
    %179 = vector.multi_reduction <add>, %178, %cst_66 [1] : vector<16x32xf32> to vector<16xf32>
    %180 = vector.shape_cast %179 : vector<16xf32> to vector<16x1xf32>
    %cst_67 = arith.constant 3.200000e+01 : f32
    %181 = vector.broadcast %cst_67 : f32 to vector<16x1xf32>
    %182 = arith.divf %180, %181 : vector<16x1xf32>
    %183 = vector.broadcast %182 : vector<16x1xf32> to vector<16x32xf32>
    %184 = arith.subf %178, %183 : vector<16x32xf32>
    %185 = arith.mulf %184, %184 : vector<16x32xf32>
    %cst_68 = arith.constant dense<0.000000e+00> : vector<16xf32>
    %186 = vector.multi_reduction <add>, %185, %cst_68 [1] : vector<16x32xf32> to vector<16xf32>
    %187 = vector.shape_cast %186 : vector<16xf32> to vector<16x1xf32>
    %cst_69 = arith.constant 3.200000e+01 : f32
    %188 = vector.broadcast %cst_69 : f32 to vector<16x1xf32>
    %189 = arith.divf %187, %188 : vector<16x1xf32>
    %190 = vector.broadcast %182 : vector<16x1xf32> to vector<16x32xf32>
    %191 = arith.subf %178, %190 : vector<16x32xf32>
    %cst_70 = arith.constant 9.99999974E-6 : f32
    %192 = vector.broadcast %cst_70 : f32 to vector<16x1xf32>
    %193 = arith.addf %189, %192 : vector<16x1xf32>
    %194 = math.rsqrt %193 : vector<16x1xf32>
    %195 = vector.broadcast %194 : vector<16x1xf32> to vector<16x32xf32>
    %196 = arith.mulf %191, %195 : vector<16x32xf32>
    %c0_71 = arith.constant 0 : index
    %c0_72 = arith.constant 0 : index
    %197 = vector.load %arg16[%c0_71, %c0_72] : memref<1x32xf32, #tpu.memory_space<vmem>>, vector<1x32xf32>
    %198 = vector.broadcast %197 : vector<1x32xf32> to vector<16x32xf32>
    %199 = arith.mulf %196, %198 : vector<16x32xf32>
    %c0_73 = arith.constant 0 : index
    %c0_74 = arith.constant 0 : index
    %200 = vector.load %arg17[%c0_73, %c0_74] : memref<1x32xf32, #tpu.memory_space<vmem>>, vector<1x32xf32>
    %201 = vector.broadcast %200 : vector<1x32xf32> to vector<16x32xf32>
    %202 = arith.addf %199, %201 : vector<16x32xf32>
    %203 = vector.shape_cast %202 : vector<16x32xf32> to vector<2x8x32xf32>
    %c0_75 = arith.constant 0 : index
    %c0_76 = arith.constant 0 : index
    %c0_77 = arith.constant 0 : index
    %204 = vector.load %arg18[%c0_75, %c0_76, %c0_77] : memref<2x8x32xf32, #tpu.memory_space<vmem>>, vector<2x8x32xf32>
    tpu.vector_store %arg18[%c0_75, %c0_76, %c0_77], %203 {strides = array<i32>} : memref<2x8x32xf32, #tpu.memory_space<vmem>>, vector<2x8x32xf32>,
    return
  }
  func.func @transform_0(%arg0: i32) -> (i32, i32, i32) {
    %c0_i32 = arith.constant 0 : i32
    %c0_i32_0 = arith.constant 0 : i32
    %c0_i32_1 = arith.constant 0 : i32
    return %arg0, %c0_i32, %c0_i32_0 : i32, i32, i32
  }
  func.func @transform_1(%arg0: i32) -> (i32, i32) {
    %c0_i32 = arith.constant 0 : i32
    %c0_i32_0 = arith.constant 0 : i32
    %c0_i32_1 = arith.constant 0 : i32
    return %c0_i32, %c0_i32_0 : i32, i32
  }
  func.func @transform_2(%arg0: i32) -> (i32, i32) {
    %c0_i32 = arith.constant 0 : i32
    %c0_i32_0 = arith.constant 0 : i32
    %c0_i32_1 = arith.constant 0 : i32
    return %c0_i32, %c0_i32_0 : i32, i32
  }
  func.func @transform_3(%arg0: i32) -> (i32, i32) {
    %c0_i32 = arith.constant 0 : i32
    %c0_i32_0 = arith.constant 0 : i32
    %c0_i32_1 = arith.constant 0 : i32
    return %c0_i32, %c0_i32_0 : i32, i32
  }
  func.func @transform_4(%arg0: i32) -> (i32, i32) {
    %c0_i32 = arith.constant 0 : i32
    %c0_i32_0 = arith.constant 0 : i32
    %c0_i32_1 = arith.constant 0 : i32
    return %c0_i32, %c0_i32_0 : i32, i32
  }
  func.func @transform_5(%arg0: i32) -> (i32, i32) {
    %c0_i32 = arith.constant 0 : i32
    %c0_i32_0 = arith.constant 0 : i32
    %c0_i32_1 = arith.constant 0 : i32
    return %c0_i32, %c0_i32_0 : i32, i32
  }
  func.func @transform_6(%arg0: i32) -> (i32, i32) {
    %c0_i32 = arith.constant 0 : i32
    %c0_i32_0 = arith.constant 0 : i32
    %c0_i32_1 = arith.constant 0 : i32
    return %c0_i32, %c0_i32_0 : i32, i32
  }
  func.func @transform_7(%arg0: i32) -> (i32, i32) {
    %c0_i32 = arith.constant 0 : i32
    %c0_i32_0 = arith.constant 0 : i32
    %c0_i32_1 = arith.constant 0 : i32
    return %c0_i32, %c0_i32_0 : i32, i32
  }
  func.func @transform_8(%arg0: i32) -> (i32, i32) {
    %c0_i32 = arith.constant 0 : i32
    %c0_i32_0 = arith.constant 0 : i32
    %c0_i32_1 = arith.constant 0 : i32
    return %c0_i32, %c0_i32_0 : i32, i32
  }
  func.func @transform_9(%arg0: i32) -> (i32, i32) {
    %c0_i32 = arith.constant 0 : i32
    %c0_i32_0 = arith.constant 0 : i32
    %c0_i32_1 = arith.constant 0 : i32
    return %c0_i32, %c0_i32_0 : i32, i32
  }
  func.func @transform_10(%arg0: i32) -> (i32, i32) {
    %c0_i32 = arith.constant 0 : i32
    %c0_i32_0 = arith.constant 0 : i32
    %c0_i32_1 = arith.constant 0 : i32
    return %c0_i32, %c0_i32_0 : i32, i32
  }
  func.func @transform_11(%arg0: i32) -> (i32, i32) {
    %c0_i32 = arith.constant 0 : i32
    %c0_i32_0 = arith.constant 0 : i32
    %c0_i32_1 = arith.constant 0 : i32
    return %c0_i32, %c0_i32_0 : i32, i32
  }
  func.func @transform_12(%arg0: i32) -> (i32, i32) {
    %c0_i32 = arith.constant 0 : i32
    %c0_i32_0 = arith.constant 0 : i32
    %c0_i32_1 = arith.constant 0 : i32
    return %c0_i32, %c0_i32_0 : i32, i32
  }
  func.func @transform_13(%arg0: i32) -> (i32, i32) {
    %c0_i32 = arith.constant 0 : i32
    %c0_i32_0 = arith.constant 0 : i32
    %c0_i32_1 = arith.constant 0 : i32
    return %c0_i32, %c0_i32_0 : i32, i32
  }
  func.func @transform_14(%arg0: i32) -> (i32, i32) {
    %c0_i32 = arith.constant 0 : i32
    %c0_i32_0 = arith.constant 0 : i32
    %c0_i32_1 = arith.constant 0 : i32
    return %c0_i32, %c0_i32_0 : i32, i32
  }
  func.func @transform_15(%arg0: i32) -> (i32, i32) {
    %c0_i32 = arith.constant 0 : i32
    %c0_i32_0 = arith.constant 0 : i32
    %c0_i32_1 = arith.constant 0 : i32
    return %c0_i32, %c0_i32_0 : i32, i32
  }
  func.func @transform_16(%arg0: i32) -> (i32, i32) {
    %c0_i32 = arith.constant 0 : i32
    %c0_i32_0 = arith.constant 0 : i32
    %c0_i32_1 = arith.constant 0 : i32
    return %c0_i32, %c0_i32_0 : i32, i32
  }
  func.func @transform_17(%arg0: i32) -> (i32, i32, i32) {
    %c0_i32 = arith.constant 0 : i32
    %c0_i32_0 = arith.constant 0 : i32
    %c0_i32_1 = arith.constant 0 : i32
    return %arg0, %c0_i32, %c0_i32_0 : i32, i32, i32
  }
  func.func @transform_18(%arg0: i32) -> (i32, i32, i32) {
    %c0_i32 = arith.constant 0 : i32
    %c0_i32_0 = arith.constant 0 : i32
    %c0_i32_1 = arith.constant 0 : i32
    return %arg0, %c0_i32, %c0_i32_0 : i32, i32, i32
  }
}

</mosaic_0001>

<llo_original>
// kernel: tpu_custom_call.1
$region0: #{tpu_custom_call.1}
  #allocation0 [shape = 'u32[]', space=smem, size = 0x4, offset = 0x4, fixed_abs, tag = 'smem constant byte address 0x4 - core index']
  #allocation1 [shape = 'u32[144,128]{1,0:T(1,128)}', space=vmem, size = 0x12000, scoped, tag = 'internal scratch']
  %s0 = inlined_call_operand.hbm [shape: f32[2,8,32], index: 0, kind: input, shape index: {}]
  %s1 = inlined_call_operand.hbm [shape: bf16[32,32], index: 1, kind: input, shape index: {}]
  %s2 = inlined_call_operand.hbm [shape: bf16[32,32], index: 2, kind: input, shape index: {}]
  %s3 = inlined_call_operand.hbm [shape: bf16[32,32], index: 3, kind: input, shape index: {}]
  %s4 = inlined_call_operand.hbm [shape: f32[1,32], index: 4, kind: input, shape index: {}]
  %s5 = inlined_call_operand.hbm [shape: f32[1,32], index: 5, kind: input, shape index: {}]
  %s6 = inlined_call_operand.hbm [shape: f32[1,32], index: 6, kind: input, shape index: {}]
  %s7 = inlined_call_operand.hbm [shape: bf16[32,32], index: 7, kind: input, shape index: {}]
  %s8 = inlined_call_operand.hbm [shape: f32[1,32], index: 8, kind: input, shape index: {}]
  %s9 = inlined_call_operand.hbm [shape: bf16[32,64], index: 9, kind: input, shape index: {}]
  %s10 = inlined_call_operand.hbm [shape: f32[1,64], index: 10, kind: input, shape index: {}]
  %s11 = inlined_call_operand.hbm [shape: bf16[64,32], index: 11, kind: input, shape index: {}]
  %s12 = inlined_call_operand.hbm [shape: f32[1,32], index: 12, kind: input, shape index: {}]
  %s13 = inlined_call_operand.hbm [shape: f32[1,32], index: 13, kind: input, shape index: {}]
  %s14 = inlined_call_operand.hbm [shape: f32[1,32], index: 14, kind: input, shape index: {}]
  %s15 = inlined_call_operand.hbm [shape: f32[1,32], index: 15, kind: input, shape index: {}]
  %s16 = inlined_call_operand.hbm [shape: f32[1,32], index: 16, kind: input, shape index: {}]
  %s17 = inlined_call_operand.hbm [shape: f32[2,8,32], index: 17, kind: output, shape index: {0}]
  %s18 = inlined_call_operand.hbm [shape: f32[2,8,8], index: 18, kind: output, shape index: {1}]
  %19 = xla_tuple %s17, %s18
  %s20 = sld [smem:[#allocation0]]
  $region154: #{tpu_custom_call.1} parent=0
    _
  %s22 = ssub.s32 1, %s20
  %s23 = scalar_select 0, %s22, %s20
  $region1: #{tpu_custom_call.1} parent=0
    #allocation2 [shape = 'u8[8192]{0}', space=vmem, size = 0x2000, scoped, tag = 'input window, operand 0, single buffered']
    #allocation3 [shape = 's32[1]{0}', space=sflag, size = 0x4, scoped, tag = 'scoped memory for tpu_custom_call.1']
    #allocation4 [shape = 's32[1]{0}', space=sflag, size = 0x4, scoped, tag = 'scoped memory for tpu_custom_call.1']
    #allocation5 [shape = 'u8[8192]{0}', space=vmem, size = 0x2000, scoped, tag = 'input window, operand 1, single buffered']
    #allocation6 [shape = 's32[1]{0}', space=sflag, size = 0x4, scoped, tag = 'scoped memory for tpu_custom_call.1']
    #allocation7 [shape = 'u8[8192]{0}', space=vmem, size = 0x2000, scoped, tag = 'input window, operand 2, single buffered']
    #allocation8 [shape = 'u8[8192]{0}', space=vmem, size = 0x2000, scoped, tag = 'input window, operand 3, single buffered']
    #allocation9 [shape = 's32[1]{0}', space=sflag, size = 0x4, scoped, tag = 'scoped memory for tpu_custom_call.1']
    #allocation10 [shape = 'u8[512]{0}', space=vmem, size = 0x400, scoped, tag = 'input window, operand 4, single buffered']
    #allocation11 [shape = 'u8[512]{0}', space=vmem, size = 0x400, scoped, tag = 'input window, operand 5, single buffered']
    #allocation12 [shape = 's32[1]{0}', space=sflag, size = 0x4, scoped, tag = 'scoped memory for tpu_custom_call.1']
    #allocation13 [shape = 'u8[512]{0}', space=vmem, size = 0x400, scoped, tag = 'input window, operand 6, single buffered']
    #allocation14 [shape = 'u8[8192]{0}', space=vmem, size = 0x2000, scoped, tag = 'input window, operand 7, single buffered']
    #allocation15 [shape = 's32[1]{0}', space=sflag, size = 0x4, scoped, tag = 'scoped memory for tpu_custom_call.1']
    #allocation16 [shape = 'u8[512]{0}', space=vmem, size = 0x400, scoped, tag = 'input window, operand 8, single buffered']
    #allocation17 [shape = 'u8[8192]{0}', space=vmem, size = 0x2000, scoped, tag = 'input window, operand 9, single buffered']
    #allocation18 [shape = 's32[1]{0}', space=sflag, size = 0x4, scoped, tag = 'scoped memory for tpu_custom_call.1']
    #allocation19 [shape = 'u8[512]{0}', space=vmem, size = 0x400, scoped, tag = 'input window, operand 10, single buffered']
    #allocation20 [shape = 'u8[16384]{0}', space=vmem, size = 0x4000, scoped, tag = 'input window, operand 11, single buffered']
    #allocation21 [shape = 's32[1]{0}', space=sflag, size = 0x4, scoped, tag = 'scoped memory for tpu_custom_call.1']
    #allocation22 [shape = 'u8[512]{0}', space=vmem, size = 0x400, scoped, tag = 'input window, operand 12, single buffered']
    #allocation23 [shape = 'u8[512]{0}', space=vmem, size = 0x400, scoped, tag = 'input window, operand 13, single buffered']
    #allocation24 [shape = 's32[1]{0}', space=sflag, size = 0x4, scoped, tag = 'scoped memory for tpu_custom_call.1']
    #allocation25 [shape = 'u8[512]{0}', space=vmem, size = 0x400, scoped, tag = 'input window, operand 14, single buffered']
    #allocation26 [shape = 'u8[512]{0}', space=vmem, size = 0x400, scoped, tag = 'input window, operand 15, single buffered']
    #allocation27 [shape = 's32[1]{0}', space=sflag, size = 0x4, scoped, tag = 'scoped memory for tpu_custom_call.1']
    #allocation28 [shape = 'u8[512]{0}', space=vmem, size = 0x400, scoped, tag = 'input window, operand 16, single buffered']
    #allocation29 [shape = 'u8[8192]{0}', space=vmem, size = 0x2000, scoped, tag = 'output window, operand 0, single buffered']
    #allocation30 [shape = 'u8[8192]{0}', space=vmem, size = 0x2000, scoped, tag = 'output window, operand 1, single buffered']
    #allocation31 [shape = 's32[1]{0}', space=sflag, size = 0x4, scoped, tag = 'scoped memory for tpu_custom_call.1']
    %24 = vsyncpa [#allocation3], 0
    %25 = vsyncpa [#allocation6], 0
    %26 = vsyncpa [#allocation9], 0
    %27 = vsyncpa [#allocation12], 0
    %28 = vsyncpa [#allocation15], 0
    %29 = vsyncpa [#allocation18], 0
    %30 = vsyncpa [#allocation21], 0
    %31 = vsyncpa [#allocation24], 0
    %32 = vsyncpa [#allocation27], 0
    %33 = vsyncpa [#allocation4], 0
    %34 = vsyncpa [#allocation31], 0
    // Predicated region
    $region2: #{tpu_custom_call.1} parent=1 // pred_check
      _
    $region3: #{tpu_custom_call.1} parent=1 // pred_check_branch
      %36 = sbr.rel (0) target = $region5
    $region4: #{tpu_custom_call.1} parent=1 // pred_region
      %s38 = ssub.s32 256, 256
      %39 = vsyncadd [#allocation3], %s38
      %s40 = sshll.u32 [#allocation2], 4
      %s41 = int_to_ptr.vmem [resolvable:$true] %s40
      %46 = dma.hbm_to_vmem [thread:$0]  %s0, 256, %s41, [#allocation3], 128, 128, 8
    $region5: #{tpu_custom_call.1} parent=1 // pred_fallthru
      _
    // Predicated region
    $region6: #{tpu_custom_call.1} parent=1 // pred_check
      _
    $region7: #{tpu_custom_call.1} parent=1 // pred_check_branch
      %48 = sbr.rel (0) target = $region9
    $region8: #{tpu_custom_call.1} parent=1 // pred_region
      %s50 = ssub.s32 256, 256
      %51 = vsyncadd [#allocation6], %s50
      %s52 = sshll.u32 [#allocation5], 4
      %s53 = int_to_ptr.vmem [resolvable:$true] %s52
      %58 = dma.hbm_to_vmem [thread:$0]  %s1, 256, %s53, [#allocation6], 64, 64, 4
    $region9: #{tpu_custom_call.1} parent=1 // pred_fallthru
      _
    // Predicated region
    $region10: #{tpu_custom_call.1} parent=1 // pred_check
      _
    $region11: #{tpu_custom_call.1} parent=1 // pred_check_branch
      %60 = sbr.rel (0) target = $region13
    $region12: #{tpu_custom_call.1} parent=1 // pred_region
      %s62 = ssub.s32 256, 256
      %63 = vsyncadd [#allocation6], %s62
      %s64 = sshll.u32 [#allocation7], 4
      %s65 = int_to_ptr.vmem [resolvable:$true] %s64
      %70 = dma.hbm_to_vmem [thread:$0]  %s2, 256, %s65, [#allocation6], 64, 64, 4
    $region13: #{tpu_custom_call.1} parent=1 // pred_fallthru
      _
    // Predicated region
    $region14: #{tpu_custom_call.1} parent=1 // pred_check
      _
    $region15: #{tpu_custom_call.1} parent=1 // pred_check_branch
      %72 = sbr.rel (0) target = $region17
    $region16: #{tpu_custom_call.1} parent=1 // pred_region
      %s74 = ssub.s32 256, 256
      %75 = vsyncadd [#allocation9], %s74
      %s76 = sshll.u32 [#allocation8], 4
      %s77 = int_to_ptr.vmem [resolvable:$true] %s76
      %82 = dma.hbm_to_vmem [thread:$0]  %s3, 256, %s77, [#allocation9], 64, 64, 4
    $region17: #{tpu_custom_call.1} parent=1 // pred_fallthru
      _
    // Predicated region
    $region18: #{tpu_custom_call.1} parent=1 // pred_check
      _
    $region19: #{tpu_custom_call.1} parent=1 // pred_check_branch
      %84 = sbr.rel (0) target = $region21
    $region20: #{tpu_custom_call.1} parent=1 // pred_region
      %s86 = ssub.s32 16, 16
      %87 = vsyncadd [#allocation9], %s86
      %s89 = sshll.u32 [#allocation10], 4
      %s90 = int_to_ptr.vmem [resolvable:$true] %s89
      %92 = dma.hbm_to_vmem [thread:$0]  %s4, 16, %s90, [#allocation9]
    $region21: #{tpu_custom_call.1} parent=1 // pred_fallthru
      _
    // Predicated region
    $region22: #{tpu_custom_call.1} parent=1 // pred_check
      _
    $region23: #{tpu_custom_call.1} parent=1 // pred_check_branch
      %94 = sbr.rel (0) target = $region25
    $region24: #{tpu_custom_call.1} parent=1 // pred_region
      %s96 = ssub.s32 16, 16
      %97 = vsyncadd [#allocation12], %s96
      %s99 = sshll.u32 [#allocation11], 4
      %s100 = int_to_ptr.vmem [resolvable:$true] %s99
      %102 = dma.hbm_to_vmem [thread:$0]  %s5, 16, %s100, [#allocation12]
    $region25: #{tpu_custom_call.1} parent=1 // pred_fallthru
      _
    // Predicated region
    $region26: #{tpu_custom_call.1} parent=1 // pred_check
      _
    $region27: #{tpu_custom_call.1} parent=1 // pred_check_branch
      %104 = sbr.rel (0) target = $region29
    $region28: #{tpu_custom_call.1} parent=1 // pred_region
      %s106 = ssub.s32 16, 16
      %107 = vsyncadd [#allocation12], %s106
      %s109 = sshll.u32 [#allocation13], 4
      %s110 = int_to_ptr.vmem [resolvable:$true] %s109
      %112 = dma.hbm_to_vmem [thread:$0]  %s6, 16, %s110, [#allocation12]
    $region29: #{tpu_custom_call.1} parent=1 // pred_fallthru
      _
    // Predicated region
    $region30: #{tpu_custom_call.1} parent=1 // pred_check
      _
    $region31: #{tpu_custom_call.1} parent=1 // pred_check_branch
      %114 = sbr.rel (0) target = $region33
    $region32: #{tpu_custom_call.1} parent=1 // pred_region
      %s116 = ssub.s32 256, 256
      %117 = vsyncadd [#allocation15], %s116
      %s118 = sshll.u32 [#allocation14], 4
      %s119 = int_to_ptr.vmem [resolvable:$true] %s118
      %124 = dma.hbm_to_vmem [thread:$0]  %s7, 256, %s119, [#allocation15], 64, 64, 4
    $region33: #{tpu_custom_call.1} parent=1 // pred_fallthru
      _
    // Predicated region
    $region34: #{tpu_custom_call.1} parent=1 // pred_check
      _
    $region35: #{tpu_custom_call.1} parent=1 // pred_check_branch
      %126 = sbr.rel (0) target = $region37
    $region36: #{tpu_custom_call.1} parent=1 // pred_region
      %s128 = ssub.s32 16, 16
      %129 = vsyncadd [#allocation15], %s128
      %s131 = sshll.u32 [#allocation16], 4
      %s132 = int_to_ptr.vmem [resolvable:$true] %s131
      %134 = dma.hbm_to_vmem [thread:$0]  %s8, 16, %s132, [#allocation15]
    $region37: #{tpu_custom_call.1} parent=1 // pred_fallthru
      _
    // Predicated region
    $region38: #{tpu_custom_call.1} parent=1 // pred_check
      _
    $region39: #{tpu_custom_call.1} parent=1 // pred_check_branch
      %136 = sbr.rel (0) target = $region41
    $region40: #{tpu_custom_call.1} parent=1 // pred_region
      %s138 = ssub.s32 256, 256
      %139 = vsyncadd [#allocation18], %s138
      %s140 = sshll.u32 [#allocation17], 4
      %s141 = int_to_ptr.vmem [resolvable:$true] %s140
      %146 = dma.hbm_to_vmem [thread:$0]  %s9, 256, %s141, [#allocation18], 64, 64, 4
    $region41: #{tpu_custom_call.1} parent=1 // pred_fallthru
      _
    // Predicated region
    $region42: #{tpu_custom_call.1} parent=1 // pred_check
      _
    $region43: #{tpu_custom_call.1} parent=1 // pred_check_branch
      %148 = sbr.rel (0) target = $region45
    $region44: #{tpu_custom_call.1} parent=1 // pred_region
      %s150 = ssub.s32 16, 16
      %151 = vsyncadd [#allocation18], %s150
      %s153 = sshll.u32 [#allocation19], 4
      %s154 = int_to_ptr.vmem [resolvable:$true] %s153
      %156 = dma.hbm_to_vmem [thread:$0]  %s10, 16, %s154, [#allocation18]
    $region45: #{tpu_custom_call.1} parent=1 // pred_fallthru
      _
    // Predicated region
    $region46: #{tpu_custom_call.1} parent=1 // pred_check
      _
    $region47: #{tpu_custom_call.1} parent=1 // pred_check_branch
      %158 = sbr.rel (0) target = $region49
    $region48: #{tpu_custom_call.1} parent=1 // pred_region
      %s160 = ssub.s32 512, 512
      %161 = vsyncadd [#allocation21], %s160
      %s162 = sshll.u32 [#allocation20], 4
      %s163 = int_to_ptr.vmem [resolvable:$true] %s162
      %168 = dma.hbm_to_vmem [thread:$0]  %s11, 512, %s163, [#allocation21], 64, 64, 4
    $region49: #{tpu_custom_call.1} parent=1 // pred_fallthru
      _
    // Predicated region
    $region50: #{tpu_custom_call.1} parent=1 // pred_check
      _
    $region51: #{tpu_custom_call.1} parent=1 // pred_check_branch
      %170 = sbr.rel (0) target = $region53
    $region52: #{tpu_custom_call.1} parent=1 // pred_region
      %s172 = ssub.s32 16, 16
      %173 = vsyncadd [#allocation21], %s172
      %s175 = sshll.u32 [#allocation22], 4
      %s176 = int_to_ptr.vmem [resolvable:$true] %s175
      %178 = dma.hbm_to_vmem [thread:$0]  %s12, 16, %s176, [#allocation21]
    $region53: #{tpu_custom_call.1} parent=1 // pred_fallthru
      _
    // Predicated region
    $region54: #{tpu_custom_call.1} parent=1 // pred_check
      _
    $region55: #{tpu_custom_call.1} parent=1 // pred_check_branch
      %180 = sbr.rel (0) target = $region57
    $region56: #{tpu_custom_call.1} parent=1 // pred_region
      %s182 = ssub.s32 16, 16
      %183 = vsyncadd [#allocation24], %s182
      %s185 = sshll.u32 [#allocation23], 4
      %s186 = int_to_ptr.vmem [resolvable:$true] %s185
      %188 = dma.hbm_to_vmem [thread:$0]  %s13, 16, %s186, [#allocation24]
    $region57: #{tpu_custom_call.1} parent=1 // pred_fallthru
      _
    // Predicated region
    $region58: #{tpu_custom_call.1} parent=1 // pred_check
      _
    $region59: #{tpu_custom_call.1} parent=1 // pred_check_branch
      %190 = sbr.rel (0) target = $region61
    $region60: #{tpu_custom_call.1} parent=1 // pred_region
      %s192 = ssub.s32 16, 16
      %193 = vsyncadd [#allocation24], %s192
      %s195 = sshll.u32 [#allocation25], 4
      %s196 = int_to_ptr.vmem [resolvable:$true] %s195
      %198 = dma.hbm_to_vmem [thread:$0]  %s14, 16, %s196, [#allocation24]
    $region61: #{tpu_custom_call.1} parent=1 // pred_fallthru
      _
    // Predicated region
    $region62: #{tpu_custom_call.1} parent=1 // pred_check
      _
    $region63: #{tpu_custom_call.1} parent=1 // pred_check_branch
      %200 = sbr.rel (0) target = $region65
    $region64: #{tpu_custom_call.1} parent=1 // pred_region
      %s202 = ssub.s32 16, 16
      %203 = vsyncadd [#allocation27], %s202
      %s205 = sshll.u32 [#allocation26], 4
      %s206 = int_to_ptr.vmem [resolvable:$true] %s205
      %208 = dma.hbm_to_vmem [thread:$0]  %s15, 16, %s206, [#allocation27]
    $region65: #{tpu_custom_call.1} parent=1 // pred_fallthru
      _
    // Predicated region
    $region66: #{tpu_custom_call.1} parent=1 // pred_check
      _
    $region67: #{tpu_custom_call.1} parent=1 // pred_check_branch
      %210 = sbr.rel (0) target = $region69
    $region68: #{tpu_custom_call.1} parent=1 // pred_region
      %s212 = ssub.s32 16, 16
      %213 = vsyncadd [#allocation27], %s212
      %s215 = sshll.u32 [#allocation28], 4
      %s216 = int_to_ptr.vmem [resolvable:$true] %s215
      %218 = dma.hbm_to_vmem [thread:$0]  %s16, 16, %s216, [#allocation27]
    $region69: #{tpu_custom_call.1} parent=1 // pred_fallthru
      _
    // Predicated region
    $region70: #{tpu_custom_call.1} parent=1 // pred_check
      _
    $region71: #{tpu_custom_call.1} parent=1 // pred_check_branch
      %220 = sbr.rel (0) target = $region73
    $region72: #{tpu_custom_call.1} parent=1 // pred_region
      %221 = dma.done [#allocation3], 256
    $region73: #{tpu_custom_call.1} parent=1 // pred_fallthru
      _
    // Predicated region
    $region74: #{tpu_custom_call.1} parent=1 // pred_check
      _
    $region75: #{tpu_custom_call.1} parent=1 // pred_check_branch
      %223 = sbr.rel (0) target = $region77
    $region76: #{tpu_custom_call.1} parent=1 // pred_region
      %224 = dma.done [#allocation6], 256
    $region77: #{tpu_custom_call.1} parent=1 // pred_fallthru
      _
    // Predicated region
    $region78: #{tpu_custom_call.1} parent=1 // pred_check
      _
    $region79: #{tpu_custom_call.1} parent=1 // pred_check_branch
      %226 = sbr.rel (0) target = $region81
    $region80: #{tpu_custom_call.1} parent=1 // pred_region
      %227 = dma.done [#allocation6], 256
    $region81: #{tpu_custom_call.1} parent=1 // pred_fallthru
      _
    // Predicated region
    $region82: #{tpu_custom_call.1} parent=1 // pred_check
      _
    $region83: #{tpu_custom_call.1} parent=1 // pred_check_branch
      %229 = sbr.rel (0) target = $region85
    $region84: #{tpu_custom_call.1} parent=1 // pred_region
      %230 = dma.done [#allocation9], 256
    $region85: #{tpu_custom_call.1} parent=1 // pred_fallthru
      _
    // Predicated region
    $region86: #{tpu_custom_call.1} parent=1 // pred_check
      _
    $region87: #{tpu_custom_call.1} parent=1 // pred_check_branch
      %232 = sbr.rel (0) target = $region89
    $region88: #{tpu_custom_call.1} parent=1 // pred_region
      %233 = dma.done [#allocation9], 16
    $region89: #{tpu_custom_call.1} parent=1 // pred_fallthru
      _
    // Predicated region
    $region90: #{tpu_custom_call.1} parent=1 // pred_check
      _
    $region91: #{tpu_custom_call.1} parent=1 // pred_check_branch
      %235 = sbr.rel (0) target = $region93
    $region92: #{tpu_custom_call.1} parent=1 // pred_region
      %236 = dma.done [#allocation12], 16
    $region93: #{tpu_custom_call.1} parent=1 // pred_fallthru
      _
    // Predicated region
    $region94: #{tpu_custom_call.1} parent=1 // pred_check
      _
    $region95: #{tpu_custom_call.1} parent=1 // pred_check_branch
      %238 = sbr.rel (0) target = $region97
    $region96: #{tpu_custom_call.1} parent=1 // pred_region
      %239 = dma.done [#allocation12], 16
    $region97: #{tpu_custom_call.1} parent=1 // pred_fallthru
      _
    // Predicated region
    $region98: #{tpu_custom_call.1} parent=1 // pred_check
      _
    $region99: #{tpu_custom_call.1} parent=1 // pred_check_branch
      %241 = sbr.rel (0) target = $region101
    $region100: #{tpu_custom_call.1} parent=1 // pred_region
      %242 = dma.done [#allocation15], 256
    $region101: #{tpu_custom_call.1} parent=1 // pred_fallthru
      _
    // Predicated region
    $region102: #{tpu_custom_call.1} parent=1 // pred_check
      _
    $region103: #{tpu_custom_call.1} parent=1 // pred_check_branch
      %244 = sbr.rel (0) target = $region105
    $region104: #{tpu_custom_call.1} parent=1 // pred_region
      %245 = dma.done [#allocation15], 16
    $region105: #{tpu_custom_call.1} parent=1 // pred_fallthru
      _
    // Predicated region
    $region106: #{tpu_custom_call.1} parent=1 // pred_check
      _
    $region107: #{tpu_custom_call.1} parent=1 // pred_check_branch
      %247 = sbr.rel (0) target = $region109
    $region108: #{tpu_custom_call.1} parent=1 // pred_region
      %248 = dma.done [#allocation18], 256
    $region109: #{tpu_custom_call.1} parent=1 // pred_fallthru
      _
    // Predicated region
    $region110: #{tpu_custom_call.1} parent=1 // pred_check
      _
    $region111: #{tpu_custom_call.1} parent=1 // pred_check_branch
      %250 = sbr.rel (0) target = $region113
    $region112: #{tpu_custom_call.1} parent=1 // pred_region
      %251 = dma.done [#allocation18], 16
    $region113: #{tpu_custom_call.1} parent=1 // pred_fallthru
      _
    // Predicated region
    $region114: #{tpu_custom_call.1} parent=1 // pred_check
      _
    $region115: #{tpu_custom_call.1} parent=1 // pred_check_branch
      %253 = sbr.rel (0) target = $region117
    $region116: #{tpu_custom_call.1} parent=1 // pred_region
      %254 = dma.done [#allocation21], 512
    $region117: #{tpu_custom_call.1} parent=1 // pred_fallthru
      _
    // Predicated region
    $region118: #{tpu_custom_call.1} parent=1 // pred_check
      _
    $region119: #{tpu_custom_call.1} parent=1 // pred_check_branch
      %256 = sbr.rel (0) target = $region121
    $region120: #{tpu_custom_call.1} parent=1 // pred_region
      %257 = dma.done [#allocation21], 16
    $region121: #{tpu_custom_call.1} parent=1 // pred_fallthru
      _
    // Predicated region
    $region122: #{tpu_custom_call.1} parent=1 // pred_check
      _
    $region123: #{tpu_custom_call.1} parent=1 // pred_check_branch
      %259 = sbr.rel (0) target = $region125
    $region124: #{tpu_custom_call.1} parent=1 // pred_region
      %260 = dma.done [#allocation24], 16
    $region125: #{tpu_custom_call.1} parent=1 // pred_fallthru
      _
    // Predicated region
    $region126: #{tpu_custom_call.1} parent=1 // pred_check
      _
    $region127: #{tpu_custom_call.1} parent=1 // pred_check_branch
      %262 = sbr.rel (0) target = $region129
    $region128: #{tpu_custom_call.1} parent=1 // pred_region
      %263 = dma.done [#allocation24], 16
    $region129: #{tpu_custom_call.1} parent=1 // pred_fallthru
      _
    // Predicated region
    $region130: #{tpu_custom_call.1} parent=1 // pred_check
      _
    $region131: #{tpu_custom_call.1} parent=1 // pred_check_branch
      %265 = sbr.rel (0) target = $region133
    $region132: #{tpu_custom_call.1} parent=1 // pred_region
      %266 = dma.done [#allocation27], 16
    $region133: #{tpu_custom_call.1} parent=1 // pred_fallthru
      _
    // Predicated region
    $region134: #{tpu_custom_call.1} parent=1 // pred_check
      _
    $region135: #{tpu_custom_call.1} parent=1 // pred_check_branch
      %268 = sbr.rel (0) target = $region137
    $region136: #{tpu_custom_call.1} parent=1 // pred_region
      %269 = dma.done [#allocation27], 16
    $region137: #{tpu_custom_call.1} parent=1 // pred_fallthru
      _
    %v271 = vld [vmem:[#allocation2] sm:$0xff]
    %v272 = vld [vmem:[#allocation2 + $0x8] sm:$0xff]
    %v273 = vpack.c.bf16 %v272, %v271
    %v274 = vld [vmem:[#allocation5] sm:$0xf]
    %v275 = vld [vmem:[#allocation5 + $0x4] sm:$0xf]
    %v276 = vld [vmem:[#allocation5 + $0x8] sm:$0xf]
    %v277 = vld [vmem:[#allocation5 + $0xc] sm:$0xf]
    %v278 = vld [vmem:[#allocation10] sm:$0x1]
    %v280 = vlaneseq
    %v281 = vshrl.u32 %v280, 7
    %v282 = vsub.s32 0, %v281
    %v283 = vrot.slane %v278, %v282
    %v289 = vunpack.c.l.b16 %v274
    %v290 = vunpack.c.l.b16 %v275
    %v291 = vunpack.c.l.b16 %v276
    %v292 = vunpack.c.l.b16 %v277
    %v293 = vpack.c.b16 %v290, %v289
    %v294 = vpack.c.b16 %v292, %v291
    %vm297 = vcmask 261120
    %v299 = vsel %vm297, %v273, 0
    %301 = vmatprep.subr.bf16.mxu0 0
    %302 = vmatpush1.bf16.msra.mxu0 %v293
    %303 = vmatprep.subr.bf16.mxu0 0
    %304 = vmatpush1.bf16.msra.mxu0 %v294
    %305 = vmatprep.subr.bf16.mxu0 0
    %306 = vmatpush1.bf16.msra.mxu0 0
    %307 = vmatprep.subr.bf16.mxu0 0
    %308 = vmatpush1.bf16.msra.mxu0 0
    %309 = vmatprep.subr.bf16.mxu0 0
    %310 = vmatpush1.bf16.msra.mxu0 0
    %311 = vmatprep.subr.bf16.mxu0 0
    %312 = vmatpush1.bf16.msra.mxu0 0
    %313 = vmatprep.subr.bf16.mxu0 0
    %314 = vmatpush1.bf16.msra.mxu0 0
    %315 = vmatprep.subr.bf16.mxu0 0
    %316 = vmatpush1.bf16.msra.mxu0 0
    %317 = vmatprep.subr.bf16.mxu0 0
    %318 = vmatpush1.bf16.msra.mxu0 0
    %319 = vmatprep.subr.bf16.mxu0 0
    %320 = vmatpush1.bf16.msra.mxu0 0
    %321 = vmatprep.subr.bf16.mxu0 0
    %322 = vmatpush1.bf16.msra.mxu0 0
    %323 = vmatprep.subr.bf16.mxu0 0
    %324 = vmatpush1.bf16.msra.mxu0 0
    %325 = vmatprep.subr.bf16.mxu0 0
    %326 = vmatpush1.bf16.msra.mxu0 0
    %327 = vmatprep.subr.bf16.mxu0 0
    %328 = vmatpush1.bf16.msra.mxu0 0
    %329 = vmatprep.subr.bf16.mxu0 0
    %330 = vmatpush1.bf16.msra.mxu0 0
    %331 = vmatprep.subr.bf16.mxu0 0
    %332 = vmatpush1.bf16.msra.mxu0 0
    %333 = vmatprep.mubr.bf16.mxu0 0
    %334 = vmatmul.mubr.bf16.gmra.mrb[0].mxu0 %v299
    %v335 = vpop.f32.mrb[0].mxu0
    %v336 = vadd.f32 %v283, %v335
    %v337 = vpop.f32.mrb[0].mxu0
    %v338 = vpop.f32.mrb[0].mxu0
    %v339 = vadd.f32 %v283, %v338
    %v340 = vpop.f32.mrb[0].mxu0
    %341 = vdwg.mxu0
    %v342 = vld [vmem:[#allocation7] sm:$0xf]
    %v343 = vld [vmem:[#allocation7 + $0x4] sm:$0xf]
    %v344 = vld [vmem:[#allocation7 + $0x8] sm:$0xf]
    %v345 = vld [vmem:[#allocation7 + $0xc] sm:$0xf]
    %v346 = vld [vmem:[#allocation11] sm:$0x1]
    %v348 = vlaneseq
    %v349 = vshrl.u32 %v348, 7
    %v350 = vsub.s32 0, %v349
    %v351 = vrot.slane %v346, %v350
    %v357 = vunpack.c.l.b16 %v342
    %v358 = vunpack.c.l.b16 %v343
    %v359 = vunpack.c.l.b16 %v344
    %v360 = vunpack.c.l.b16 %v345
    %v361 = vpack.c.b16 %v358, %v357
    %v362 = vpack.c.b16 %v360, %v359
    %365 = vmatprep.subr.bf16.mxu0 0
    %366 = vmatpush1.bf16.msra.mxu0 %v361
    %367 = vmatprep.subr.bf16.mxu0 0
    %368 = vmatpush1.bf16.msra.mxu0 %v362
    %369 = vmatprep.subr.bf16.mxu0 0
    %370 = vmatpush1.bf16.msra.mxu0 0
    %371 = vmatprep.subr.bf16.mxu0 0
    %372 = vmatpush1.bf16.msra.mxu0 0
    %373 = vmatprep.subr.bf16.mxu0 0
    %374 = vmatpush1.bf16.msra.mxu0 0
    %375 = vmatprep.subr.bf16.mxu0 0
    %376 = vmatpush1.bf16.msra.mxu0 0
    %377 = vmatprep.subr.bf16.mxu0 0
    %378 = vmatpush1.bf16.msra.mxu0 0
    %379 = vmatprep.subr.bf16.mxu0 0
    %380 = vmatpush1.bf16.msra.mxu0 0
    %381 = vmatprep.subr.bf16.mxu0 0
    %382 = vmatpush1.bf16.msra.mxu0 0
    %383 = vmatprep.subr.bf16.mxu0 0
    %384 = vmatpush1.bf16.msra.mxu0 0
    %385 = vmatprep.subr.bf16.mxu0 0
    %386 = vmatpush1.bf16.msra.mxu0 0
    %387 = vmatprep.subr.bf16.mxu0 0
    %388 = vmatpush1.bf16.msra.mxu0 0
    %389 = vmatprep.subr.bf16.mxu0 0
    %390 = vmatpush1.bf16.msra.mxu0 0
    %391 = vmatprep.subr.bf16.mxu0 0
    %392 = vmatpush1.bf16.msra.mxu0 0
    %393 = vmatprep.subr.bf16.mxu0 0
    %394 = vmatpush1.bf16.msra.mxu0 0
    %395 = vmatprep.subr.bf16.mxu0 0
    %396 = vmatpush1.bf16.msra.mxu0 0
    %397 = vmatprep.mubr.bf16.mxu0 0
    %398 = vmatmul.mubr.bf16.gmra.mrb[0].mxu0 %v299
    %v399 = vpop.f32.mrb[0].mxu0
    %v400 = vadd.f32 %v351, %v399
    %v401 = vpop.f32.mrb[0].mxu0
    %v402 = vpop.f32.mrb[0].mxu0
    %v403 = vadd.f32 %v351, %v402
    %v404 = vpop.f32.mrb[0].mxu0
    %405 = vdwg.mxu0
    %v406 = vld [vmem:[#allocation8] sm:$0xf]
    %v407 = vld [vmem:[#allocation8 + $0x4] sm:$0xf]
    %v408 = vld [vmem:[#allocation8 + $0x8] sm:$0xf]
    %v409 = vld [vmem:[#allocation8 + $0xc] sm:$0xf]
    %v410 = vld [vmem:[#allocation13] sm:$0x1]
    %v412 = vlaneseq
    %v413 = vshrl.u32 %v412, 7
    %v414 = vsub.s32 0, %v413
    %v415 = vrot.slane %v410, %v414
    %v421 = vunpack.c.l.b16 %v406
    %v422 = vunpack.c.l.b16 %v407
    %v423 = vunpack.c.l.b16 %v408
    %v424 = vunpack.c.l.b16 %v409
    %v425 = vpack.c.b16 %v422, %v421
    %v426 = vpack.c.b16 %v424, %v423
    %429 = vmatprep.subr.bf16.mxu0 0
    %430 = vmatpush1.bf16.msra.mxu0 %v425
    %431 = vmatprep.subr.bf16.mxu0 0
    %432 = vmatpush1.bf16.msra.mxu0 %v426
    %433 = vmatprep.subr.bf16.mxu0 0
    %434 = vmatpush1.bf16.msra.mxu0 0
    %435 = vmatprep.subr.bf16.mxu0 0
    %436 = vmatpush1.bf16.msra.mxu0 0
    %437 = vmatprep.subr.bf16.mxu0 0
    %438 = vmatpush1.bf16.msra.mxu0 0
    %439 = vmatprep.subr.bf16.mxu0 0
    %440 = vmatpush1.bf16.msra.mxu0 0
    %441 = vmatprep.subr.bf16.mxu0 0
    %442 = vmatpush1.bf16.msra.mxu0 0
    %443 = vmatprep.subr.bf16.mxu0 0
    %444 = vmatpush1.bf16.msra.mxu0 0
    %445 = vmatprep.subr.bf16.mxu0 0
    %446 = vmatpush1.bf16.msra.mxu0 0
    %447 = vmatprep.subr.bf16.mxu0 0
    %448 = vmatpush1.bf16.msra.mxu0 0
    %449 = vmatprep.subr.bf16.mxu0 0
    %450 = vmatpush1.bf16.msra.mxu0 0
    %451 = vmatprep.subr.bf16.mxu0 0
    %452 = vmatpush1.bf16.msra.mxu0 0
    %453 = vmatprep.subr.bf16.mxu0 0
    %454 = vmatpush1.bf16.msra.mxu0 0
    %455 = vmatprep.subr.bf16.mxu0 0
    %456 = vmatpush1.bf16.msra.mxu0 0
    %457 = vmatprep.subr.bf16.mxu0 0
    %458 = vmatpush1.bf16.msra.mxu0 0
    %459 = vmatprep.subr.bf16.mxu0 0
    %460 = vmatpush1.bf16.msra.mxu0 0
    %461 = vmatprep.mubr.bf16.mxu0 0
    %462 = vmatmul.mubr.bf16.gmra.mrb[0].mxu0 %v299
    %v463 = vpop.f32.mrb[0].mxu0
    %v464 = vadd.f32 %v415, %v463
    %v465 = vpop.f32.mrb[0].mxu0
    %v466 = vpop.f32.mrb[0].mxu0
    %v467 = vadd.f32 %v415, %v466
    %v468 = vpop.f32.mrb[0].mxu0
    %469 = vdwg.mxu0
    %v470 = vld [vmem:[#allocation14] sm:$0xf]
    %v471 = vld [vmem:[#allocation14 + $0x4] sm:$0xf]
    %v472 = vld [vmem:[#allocation14 + $0x8] sm:$0xf]
    %v473 = vld [vmem:[#allocation14 + $0xc] sm:$0xf]
    %v474 = vpack.c.bf16 %v336, %v336
    %v475 = vpack.c.bf16 %v339, %v339
    %v476 = vpack.c.bf16 %v400, %v400
    %v477 = vpack.c.bf16 %v403, %v403
    %v478 = vpack.c.bf16 %v464, %v464
    %v479 = vpack.c.bf16 %v467, %v467
    %vm480 = vcmask 64512
    %v482 = vsel %vm480, %v474, 0
    %v485 = vsel %vm480, %v476, 0
    %487 = vmatprep.subr.bf16.mxu0 0
    %488 = vmatpush1.bf16.xpose.msra.mxu0 %v485
    %489 = vmatprep.subr.bf16.mxu0 0
    %490 = vmatpush1.bf16.xpose.msra.mxu0 0
    %491 = vmatprep.subr.bf16.mxu0 0
    %492 = vmatpush1.bf16.xpose.msra.mxu0 0
    %493 = vmatprep.subr.bf16.mxu0 0
    %494 = vmatpush1.bf16.xpose.msra.mxu0 0
    %495 = vmatprep.subr.bf16.mxu0 0
    %496 = vmatpush1.bf16.xpose.msra.mxu0 0
    %497 = vmatprep.subr.bf16.mxu0 0
    %498 = vmatpush1.bf16.xpose.msra.mxu0 0
    %499 = vmatprep.subr.bf16.mxu0 0
    %500 = vmatpush1.bf16.xpose.msra.mxu0 0
    %501 = vmatprep.subr.bf16.mxu0 0
    %502 = vmatpush1.bf16.xpose.msra.mxu0 0
    %503 = vmatprep.subr.bf16.mxu0 0
    %504 = vmatpush1.bf16.xpose.msra.mxu0 0
    %505 = vmatprep.subr.bf16.mxu0 0
    %506 = vmatpush1.bf16.xpose.msra.mxu0 0
    %507 = vmatprep.subr.bf16.mxu0 0
    %508 = vmatpush1.bf16.xpose.msra.mxu0 0
    %509 = vmatprep.subr.bf16.mxu0 0
    %510 = vmatpush1.bf16.xpose.msra.mxu0 0
    %511 = vmatprep.subr.bf16.mxu0 0
    %512 = vmatpush1.bf16.xpose.msra.mxu0 0
    %513 = vmatprep.subr.bf16.mxu0 0
    %514 = vmatpush1.bf16.xpose.msra.mxu0 0
    %515 = vmatprep.subr.bf16.mxu0 0
    %516 = vmatpush1.bf16.xpose.msra.mxu0 0
    %517 = vmatprep.subr.bf16.mxu0 0
    %518 = vmatpush1.bf16.xpose.msra.mxu0 0
    %519 = vmatprep.mubr.bf16.mxu0 0
    %520 = vmatmul.mubr.bf16.gmra.mrb[0].mxu0 %v482
    %v521 = vpop.f32.mrb[0].mxu0
    %v522 = vadd.f32 0.0, %v521
    %v523 = vpop.f32.mrb[0].mxu0
    %v524 = vpop.f32.mrb[0].mxu0
    %v525 = vpop.f32.mrb[0].mxu0
    %526 = vdwg.mxu0
    %v528 = vsel %vm480, %v475, 0
    %v531 = vsel %vm480, %v477, 0
    %533 = vmatprep.subr.bf16.mxu0 0
    %534 = vmatpush1.bf16.xpose.msra.mxu0 %v531
    %535 = vmatprep.subr.bf16.mxu0 0
    %536 = vmatpush1.bf16.xpose.msra.mxu0 0
    %537 = vmatprep.subr.bf16.mxu0 0
    %538 = vmatpush1.bf16.xpose.msra.mxu0 0
    %539 = vmatprep.subr.bf16.mxu0 0
    %540 = vmatpush1.bf16.xpose.msra.mxu0 0
    %541 = vmatprep.subr.bf16.mxu0 0
    %542 = vmatpush1.bf16.xpose.msra.mxu0 0
    %543 = vmatprep.subr.bf16.mxu0 0
    %544 = vmatpush1.bf16.xpose.msra.mxu0 0
    %545 = vmatprep.subr.bf16.mxu0 0
    %546 = vmatpush1.bf16.xpose.msra.mxu0 0
    %547 = vmatprep.subr.bf16.mxu0 0
    %548 = vmatpush1.bf16.xpose.msra.mxu0 0
    %549 = vmatprep.subr.bf16.mxu0 0
    %550 = vmatpush1.bf16.xpose.msra.mxu0 0
    %551 = vmatprep.subr.bf16.mxu0 0
    %552 = vmatpush1.bf16.xpose.msra.mxu0 0
    %553 = vmatprep.subr.bf16.mxu0 0
    %554 = vmatpush1.bf16.xpose.msra.mxu0 0
    %555 = vmatprep.subr.bf16.mxu0 0
    %556 = vmatpush1.bf16.xpose.msra.mxu0 0
    %557 = vmatprep.subr.bf16.mxu0 0
    %558 = vmatpush1.bf16.xpose.msra.mxu0 0
    %559 = vmatprep.subr.bf16.mxu0 0
    %560 = vmatpush1.bf16.xpose.msra.mxu0 0
    %561 = vmatprep.subr.bf16.mxu0 0
    %562 = vmatpush1.bf16.xpose.msra.mxu0 0
    %563 = vmatprep.subr.bf16.mxu0 0
    %564 = vmatpush1.bf16.xpose.msra.mxu0 0
    %565 = vmatprep.mubr.bf16.mxu0 0
    %566 = vmatmul.mubr.bf16.gmra.mrb[0].mxu0 %v528
    %v567 = vpop.f32.mrb[0].mxu0
    %v568 = vadd.f32 0.0, %v567
    %v569 = vpop.f32.mrb[0].mxu0
    %v570 = vpop.f32.mrb[0].mxu0
    %v571 = vpop.f32.mrb[0].mxu0
    %572 = vdwg.mxu0
    %v573 = vsel %vm480, %v522, -inf
    %574 = vmax.xlane.f32.xlu0 %v573
    %v575 = vpop.xlane.xlu0 %574
    %v576 = vsel %vm480, %v568, -inf
    %577 = vmax.xlane.f32.xlu0 %v576
    %v578 = vpop.xlane.xlu0 %577
    %v579 = vsub.f32 %v522, %v575
    %v580 = vsub.f32 %v568, %v578
    %v581 = vmul.f32 %v579, 1.442695
    %v582 = vpow.pop %v581
    %v583 = vmul.f32 %v580, 1.442695
    %v584 = vpow.pop %v583
    %v585 = vsel %vm480, %v582, 0.0
    %586 = vadd.xlane.f32.xlu0 %v585
    %v587 = vpop.xlane.xlu0 %586
    %v588 = vsel %vm480, %v584, 0.0
    %589 = vadd.xlane.f32.xlu0 %v588
    %v590 = vpop.xlane.xlu0 %589
    %v591 = vrcp.pop %v587
    %v592 = vrcp.pop %v590
    %v593 = vmul.f32 %v582, %v591
    %v594 = vmul.f32 %v584, %v592
    %v595 = vadd.f32 %v593, 0.0
    %v596 = vadd.f32 %v594, 0.0
    %v597 = vpack.c.bf16 %v593, %v593
    %v598 = vpack.c.bf16 %v594, %v594
    %v600 = vsel %vm480, %v597, 0
    %vm602 = vcmask 1043456
    %v604 = vsel %vm602, %v478, 0
    %606 = vmatprep.subr.bf16.mxu0 0
    %607 = vmatpush1.bf16.msra.mxu0 %v604
    %608 = vmatprep.subr.bf16.mxu0 0
    %609 = vmatpush1.bf16.msra.mxu0 0
    %610 = vmatprep.subr.bf16.mxu0 0
    %611 = vmatpush1.bf16.msra.mxu0 0
    %612 = vmatprep.subr.bf16.mxu0 0
    %613 = vmatpush1.bf16.msra.mxu0 0
    %614 = vmatprep.subr.bf16.mxu0 0
    %615 = vmatpush1.bf16.msra.mxu0 0
    %616 = vmatprep.subr.bf16.mxu0 0
    %617 = vmatpush1.bf16.msra.mxu0 0
    %618 = vmatprep.subr.bf16.mxu0 0
    %619 = vmatpush1.bf16.msra.mxu0 0
    %620 = vmatprep.subr.bf16.mxu0 0
    %621 = vmatpush1.bf16.msra.mxu0 0
    %622 = vmatprep.subr.bf16.mxu0 0
    %623 = vmatpush1.bf16.msra.mxu0 0
    %624 = vmatprep.subr.bf16.mxu0 0
    %625 = vmatpush1.bf16.msra.mxu0 0
    %626 = vmatprep.subr.bf16.mxu0 0
    %627 = vmatpush1.bf16.msra.mxu0 0
    %628 = vmatprep.subr.bf16.mxu0 0
    %629 = vmatpush1.bf16.msra.mxu0 0
    %630 = vmatprep.subr.bf16.mxu0 0
    %631 = vmatpush1.bf16.msra.mxu0 0
    %632 = vmatprep.subr.bf16.mxu0 0
    %633 = vmatpush1.bf16.msra.mxu0 0
    %634 = vmatprep.subr.bf16.mxu0 0
    %635 = vmatpush1.bf16.msra.mxu0 0
    %636 = vmatprep.subr.bf16.mxu0 0
    %637 = vmatpush1.bf16.msra.mxu0 0
    %638 = vmatprep.mubr.bf16.mxu0 0
    %639 = vmatmul.mubr.bf16.gmra.mrb[0].mxu0 %v600
    %v640 = vpop.f32.mrb[0].mxu0
    %v641 = vadd.f32 0.0, %v640
    %v642 = vpop.f32.mrb[0].mxu0
    %v643 = vpop.f32.mrb[0].mxu0
    %v644 = vpop.f32.mrb[0].mxu0
    %645 = vdwg.mxu0
    %v647 = vsel %vm480, %v598, 0
    %v650 = vsel %vm602, %v479, 0
    %652 = vmatprep.subr.bf16.mxu0 0
    %653 = vmatpush1.bf16.msra.mxu0 %v650
    %654 = vmatprep.subr.bf16.mxu0 0
    %655 = vmatpush1.bf16.msra.mxu0 0
    %656 = vmatprep.subr.bf16.mxu0 0
    %657 = vmatpush1.bf16.msra.mxu0 0
    %658 = vmatprep.subr.bf16.mxu0 0
    %659 = vmatpush1.bf16.msra.mxu0 0
    %660 = vmatprep.subr.bf16.mxu0 0
    %661 = vmatpush1.bf16.msra.mxu0 0
    %662 = vmatprep.subr.bf16.mxu0 0
    %663 = vmatpush1.bf16.msra.mxu0 0
    %664 = vmatprep.subr.bf16.mxu0 0
    %665 = vmatpush1.bf16.msra.mxu0 0
    %666 = vmatprep.subr.bf16.mxu0 0
    %667 = vmatpush1.bf16.msra.mxu0 0
    %668 = vmatprep.subr.bf16.mxu0 0
    %669 = vmatpush1.bf16.msra.mxu0 0
    %670 = vmatprep.subr.bf16.mxu0 0
    %671 = vmatpush1.bf16.msra.mxu0 0
    %672 = vmatprep.subr.bf16.mxu0 0
    %673 = vmatpush1.bf16.msra.mxu0 0
    %674 = vmatprep.subr.bf16.mxu0 0
    %675 = vmatpush1.bf16.msra.mxu0 0
    %676 = vmatprep.subr.bf16.mxu0 0
    %677 = vmatpush1.bf16.msra.mxu0 0
    %678 = vmatprep.subr.bf16.mxu0 0
    %679 = vmatpush1.bf16.msra.mxu0 0
    %680 = vmatprep.subr.bf16.mxu0 0
    %681 = vmatpush1.bf16.msra.mxu0 0
    %682 = vmatprep.subr.bf16.mxu0 0
    %683 = vmatpush1.bf16.msra.mxu0 0
    %684 = vmatprep.mubr.bf16.mxu0 0
    %685 = vmatmul.mubr.bf16.gmra.mrb[0].mxu0 %v647
    %v686 = vpop.f32.mrb[0].mxu0
    %v687 = vadd.f32 0.0, %v686
    %v688 = vpop.f32.mrb[0].mxu0
    %v689 = vpop.f32.mrb[0].mxu0
    %v690 = vpop.f32.mrb[0].mxu0
    %691 = vdwg.mxu0
    %v692 = vpack.c.bf16 %v687, %v641
    %694 = vrot.lane.b32.xlu0 %v474, 120
    %v695 = vpop.permute.xlu0 %694
    %697 = vrot.lane.b32.xlu0 %v476, 120
    %v698 = vpop.permute.xlu0 %697
    %v700 = vsel %vm480, %v695, 0
    %v703 = vsel %vm480, %v698, 0
    %705 = vmatprep.subr.bf16.mxu0 0
    %706 = vmatpush1.bf16.xpose.msra.mxu0 %v703
    %707 = vmatprep.subr.bf16.mxu0 0
    %708 = vmatpush1.bf16.xpose.msra.mxu0 0
    %709 = vmatprep.subr.bf16.mxu0 0
    %710 = vmatpush1.bf16.xpose.msra.mxu0 0
    %711 = vmatprep.subr.bf16.mxu0 0
    %712 = vmatpush1.bf16.xpose.msra.mxu0 0
    %713 = vmatprep.subr.bf16.mxu0 0
    %714 = vmatpush1.bf16.xpose.msra.mxu0 0
    %715 = vmatprep.subr.bf16.mxu0 0
    %716 = vmatpush1.bf16.xpose.msra.mxu0 0
    %717 = vmatprep.subr.bf16.mxu0 0
    %718 = vmatpush1.bf16.xpose.msra.mxu0 0
    %719 = vmatprep.subr.bf16.mxu0 0
    %720 = vmatpush1.bf16.xpose.msra.mxu0 0
    %721 = vmatprep.subr.bf16.mxu0 0
    %722 = vmatpush1.bf16.xpose.msra.mxu0 0
    %723 = vmatprep.subr.bf16.mxu0 0
    %724 = vmatpush1.bf16.xpose.msra.mxu0 0
    %725 = vmatprep.subr.bf16.mxu0 0
    %726 = vmatpush1.bf16.xpose.msra.mxu0 0
    %727 = vmatprep.subr.bf16.mxu0 0
    %728 = vmatpush1.bf16.xpose.msra.mxu0 0
    %729 = vmatprep.subr.bf16.mxu0 0
    %730 = vmatpush1.bf16.xpose.msra.mxu0 0
    %731 = vmatprep.subr.bf16.mxu0 0
    %732 = vmatpush1.bf16.xpose.msra.mxu0 0
    %733 = vmatprep.subr.bf16.mxu0 0
    %734 = vmatpush1.bf16.xpose.msra.mxu0 0
    %735 = vmatprep.subr.bf16.mxu0 0
    %736 = vmatpush1.bf16.xpose.msra.mxu0 0
    %737 = vmatprep.mubr.bf16.mxu0 0
    %738 = vmatmul.mubr.bf16.gmra.mrb[0].mxu0 %v700
    %v739 = vpop.f32.mrb[0].mxu0
    %v740 = vadd.f32 0.0, %v739
    %v741 = vpop.f32.mrb[0].mxu0
    %v742 = vpop.f32.mrb[0].mxu0
    %v743 = vpop.f32.mrb[0].mxu0
    %744 = vdwg.mxu0
    %746 = vrot.lane.b32.xlu0 %v475, 120
    %v747 = vpop.permute.xlu0 %746
    %749 = vrot.lane.b32.xlu0 %v477, 120
    %v750 = vpop.permute.xlu0 %749
    %v752 = vsel %vm480, %v747, 0
    %v755 = vsel %vm480, %v750, 0
    %757 = vmatprep.subr.bf16.mxu0 0
    %758 = vmatpush1.bf16.xpose.msra.mxu0 %v755
    %759 = vmatprep.subr.bf16.mxu0 0
    %760 = vmatpush1.bf16.xpose.msra.mxu0 0
    %761 = vmatprep.subr.bf16.mxu0 0
    %762 = vmatpush1.bf16.xpose.msra.mxu0 0
    %763 = vmatprep.subr.bf16.mxu0 0
    %764 = vmatpush1.bf16.xpose.msra.mxu0 0
    %765 = vmatprep.subr.bf16.mxu0 0
    %766 = vmatpush1.bf16.xpose.msra.mxu0 0
    %767 = vmatprep.subr.bf16.mxu0 0
    %768 = vmatpush1.bf16.xpose.msra.mxu0 0
    %769 = vmatprep.subr.bf16.mxu0 0
    %770 = vmatpush1.bf16.xpose.msra.mxu0 0
    %771 = vmatprep.subr.bf16.mxu0 0
    %772 = vmatpush1.bf16.xpose.msra.mxu0 0
    %773 = vmatprep.subr.bf16.mxu0 0
    %774 = vmatpush1.bf16.xpose.msra.mxu0 0
    %775 = vmatprep.subr.bf16.mxu0 0
    %776 = vmatpush1.bf16.xpose.msra.mxu0 0
    %777 = vmatprep.subr.bf16.mxu0 0
    %778 = vmatpush1.bf16.xpose.msra.mxu0 0
    %779 = vmatprep.subr.bf16.mxu0 0
    %780 = vmatpush1.bf16.xpose.msra.mxu0 0
    %781 = vmatprep.subr.bf16.mxu0 0
    %782 = vmatpush1.bf16.xpose.msra.mxu0 0
    %783 = vmatprep.subr.bf16.mxu0 0
    %784 = vmatpush1.bf16.xpose.msra.mxu0 0
    %785 = vmatprep.subr.bf16.mxu0 0
    %786 = vmatpush1.bf16.xpose.msra.mxu0 0
    %787 = vmatprep.subr.bf16.mxu0 0
    %788 = vmatpush1.bf16.xpose.msra.mxu0 0
    %789 = vmatprep.mubr.bf16.mxu0 0
    %790 = vmatmul.mubr.bf16.gmra.mrb[0].mxu0 %v752
    %v791 = vpop.f32.mrb[0].mxu0
    %v792 = vadd.f32 0.0, %v791
    %v793 = vpop.f32.mrb[0].mxu0
    %v794 = vpop.f32.mrb[0].mxu0
    %v795 = vpop.f32.mrb[0].mxu0
    %796 = vdwg.mxu0
    %v797 = vsel %vm480, %v740, -inf
    %798 = vmax.xlane.f32.xlu0 %v797
    %v799 = vpop.xlane.xlu0 %798
    %v800 = vsel %vm480, %v792, -inf
    %801 = vmax.xlane.f32.xlu0 %v800
    %v802 = vpop.xlane.xlu0 %801
    %v803 = vsub.f32 %v740, %v799
    %v804 = vsub.f32 %v792, %v802
    %v805 = vmul.f32 %v803, 1.442695
    %v806 = vpow.pop %v805
    %v807 = vmul.f32 %v804, 1.442695
    %v808 = vpow.pop %v807
    %v809 = vsel %vm480, %v806, 0.0
    %810 = vadd.xlane.f32.xlu0 %v809
    %v811 = vpop.xlane.xlu0 %810
    %v812 = vsel %vm480, %v808, 0.0
    %813 = vadd.xlane.f32.xlu0 %v812
    %v814 = vpop.xlane.xlu0 %813
    %v815 = vrcp.pop %v811
    %v816 = vrcp.pop %v814
    %v817 = vmul.f32 %v806, %v815
    %v818 = vmul.f32 %v808, %v816
    %v819 = vadd.f32 %v595, %v817
    %v820 = vadd.f32 %v596, %v818
    %v821 = vpack.c.bf16 %v817, %v817
    %v822 = vpack.c.bf16 %v818, %v818
    %824 = vrot.lane.b32.xlu0 %v478, 120
    %v825 = vpop.permute.xlu0 %824
    %v827 = vsel %vm480, %v821, 0
    %v830 = vsel %vm602, %v825, 0
    %832 = vmatprep.subr.bf16.mxu0 0
    %833 = vmatpush1.bf16.msra.mxu0 %v830
    %834 = vmatprep.subr.bf16.mxu0 0
    %835 = vmatpush1.bf16.msra.mxu0 0
    %836 = vmatprep.subr.bf16.mxu0 0
    %837 = vmatpush1.bf16.msra.mxu0 0
    %838 = vmatprep.subr.bf16.mxu0 0
    %839 = vmatpush1.bf16.msra.mxu0 0
    %840 = vmatprep.subr.bf16.mxu0 0
    %841 = vmatpush1.bf16.msra.mxu0 0
    %842 = vmatprep.subr.bf16.mxu0 0
    %843 = vmatpush1.bf16.msra.mxu0 0
    %844 = vmatprep.subr.bf16.mxu0 0
    %845 = vmatpush1.bf16.msra.mxu0 0
    %846 = vmatprep.subr.bf16.mxu0 0
    %847 = vmatpush1.bf16.msra.mxu0 0
    %848 = vmatprep.subr.bf16.mxu0 0
    %849 = vmatpush1.bf16.msra.mxu0 0
    %850 = vmatprep.subr.bf16.mxu0 0
    %851 = vmatpush1.bf16.msra.mxu0 0
    %852 = vmatprep.subr.bf16.mxu0 0
    %853 = vmatpush1.bf16.msra.mxu0 0
    %854 = vmatprep.subr.bf16.mxu0 0
    %855 = vmatpush1.bf16.msra.mxu0 0
    %856 = vmatprep.subr.bf16.mxu0 0
    %857 = vmatpush1.bf16.msra.mxu0 0
    %858 = vmatprep.subr.bf16.mxu0 0
    %859 = vmatpush1.bf16.msra.mxu0 0
    %860 = vmatprep.subr.bf16.mxu0 0
    %861 = vmatpush1.bf16.msra.mxu0 0
    %862 = vmatprep.subr.bf16.mxu0 0
    %863 = vmatpush1.bf16.msra.mxu0 0
    %864 = vmatprep.mubr.bf16.mxu0 0
    %865 = vmatmul.mubr.bf16.gmra.mrb[0].mxu0 %v827
    %v866 = vpop.f32.mrb[0].mxu0
    %v867 = vadd.f32 0.0, %v866
    %v868 = vpop.f32.mrb[0].mxu0
    %v869 = vpop.f32.mrb[0].mxu0
    %v870 = vpop.f32.mrb[0].mxu0
    %871 = vdwg.mxu0
    %873 = vrot.lane.b32.xlu0 %v479, 120
    %v874 = vpop.permute.xlu0 %873
    %v876 = vsel %vm480, %v822, 0
    %v879 = vsel %vm602, %v874, 0
    %881 = vmatprep.subr.bf16.mxu0 0
    %882 = vmatpush1.bf16.msra.mxu0 %v879
    %883 = vmatprep.subr.bf16.mxu0 0
    %884 = vmatpush1.bf16.msra.mxu0 0
    %885 = vmatprep.subr.bf16.mxu0 0
    %886 = vmatpush1.bf16.msra.mxu0 0
    %887 = vmatprep.subr.bf16.mxu0 0
    %888 = vmatpush1.bf16.msra.mxu0 0
    %889 = vmatprep.subr.bf16.mxu0 0
    %890 = vmatpush1.bf16.msra.mxu0 0
    %891 = vmatprep.subr.bf16.mxu0 0
    %892 = vmatpush1.bf16.msra.mxu0 0
    %893 = vmatprep.subr.bf16.mxu0 0
    %894 = vmatpush1.bf16.msra.mxu0 0
    %895 = vmatprep.subr.bf16.mxu0 0
    %896 = vmatpush1.bf16.msra.mxu0 0
    %897 = vmatprep.subr.bf16.mxu0 0
    %898 = vmatpush1.bf16.msra.mxu0 0
    %899 = vmatprep.subr.bf16.mxu0 0
    %900 = vmatpush1.bf16.msra.mxu0 0
    %901 = vmatprep.subr.bf16.mxu0 0
    %902 = vmatpush1.bf16.msra.mxu0 0
    %903 = vmatprep.subr.bf16.mxu0 0
    %904 = vmatpush1.bf16.msra.mxu0 0
    %905 = vmatprep.subr.bf16.mxu0 0
    %906 = vmatpush1.bf16.msra.mxu0 0
    %907 = vmatprep.subr.bf16.mxu0 0
    %908 = vmatpush1.bf16.msra.mxu0 0
    %909 = vmatprep.subr.bf16.mxu0 0
    %910 = vmatpush1.bf16.msra.mxu0 0
    %911 = vmatprep.subr.bf16.mxu0 0
    %912 = vmatpush1.bf16.msra.mxu0 0
    %913 = vmatprep.mubr.bf16.mxu0 0
    %914 = vmatmul.mubr.bf16.gmra.mrb[0].mxu0 %v876
    %v915 = vpop.f32.mrb[0].mxu0
    %v916 = vadd.f32 0.0, %v915
    %v917 = vpop.f32.mrb[0].mxu0
    %v918 = vpop.f32.mrb[0].mxu0
    %v919 = vpop.f32.mrb[0].mxu0
    %920 = vdwg.mxu0
    %v921 = vpack.c.bf16 %v916, %v867
    %v923 = vsel %vm480, %v921, 0
    %v926 = vsel %vm602, %v471, 0
    %928 = vmatprep.subr.bf16.mxu0 0
    %929 = vmatpush1.bf16.msra.mxu0 %v926
    %930 = vmatprep.subr.bf16.mxu0 0
    %931 = vmatpush1.bf16.msra.mxu0 0
    %932 = vmatprep.subr.bf16.mxu0 0
    %933 = vmatpush1.bf16.msra.mxu0 0
    %934 = vmatprep.subr.bf16.mxu0 0
    %935 = vmatpush1.bf16.msra.mxu0 0
    %936 = vmatprep.subr.bf16.mxu0 0
    %937 = vmatpush1.bf16.msra.mxu0 0
    %938 = vmatprep.subr.bf16.mxu0 0
    %939 = vmatpush1.bf16.msra.mxu0 0
    %940 = vmatprep.subr.bf16.mxu0 0
    %941 = vmatpush1.bf16.msra.mxu0 0
    %942 = vmatprep.subr.bf16.mxu0 0
    %943 = vmatpush1.bf16.msra.mxu0 0
    %944 = vmatprep.subr.bf16.mxu0 0
    %945 = vmatpush1.bf16.msra.mxu0 0
    %946 = vmatprep.subr.bf16.mxu0 0
    %947 = vmatpush1.bf16.msra.mxu0 0
    %948 = vmatprep.subr.bf16.mxu0 0
    %949 = vmatpush1.bf16.msra.mxu0 0
    %950 = vmatprep.subr.bf16.mxu0 0
    %951 = vmatpush1.bf16.msra.mxu0 0
    %952 = vmatprep.subr.bf16.mxu0 0
    %953 = vmatpush1.bf16.msra.mxu0 0
    %954 = vmatprep.subr.bf16.mxu0 0
    %955 = vmatpush1.bf16.msra.mxu0 0
    %956 = vmatprep.subr.bf16.mxu0 0
    %957 = vmatpush1.bf16.msra.mxu0 0
    %958 = vmatprep.subr.bf16.mxu0 0
    %959 = vmatpush1.bf16.msra.mxu0 0
    %960 = vmatprep.mubr.bf16.mxu0 0
    %961 = vmatmul.mubr.bf16.gmra.mrb[0].mxu0 %v923
    %v962 = vpop.f32.mrb[0].mxu0
    %v963 = vadd.f32 0.0, %v962
    %v964 = vpop.f32.mrb[0].mxu0
    %v965 = vpop.f32.mrb[0].mxu0
    %v966 = vadd.f32 0.0, %v965
    %v967 = vpop.f32.mrb[0].mxu0
    %968 = vdwg.mxu0
    %v970 = vsel %vm480, %v692, 0
    %v973 = vsel %vm602, %v470, 0
    %975 = vmatprep.subr.bf16.mxu0 0
    %976 = vmatpush1.bf16.msra.mxu0 %v973
    %977 = vmatprep.subr.bf16.mxu0 0
    %978 = vmatpush1.bf16.msra.mxu0 0
    %979 = vmatprep.subr.bf16.mxu0 0
    %980 = vmatpush1.bf16.msra.mxu0 0
    %981 = vmatprep.subr.bf16.mxu0 0
    %982 = vmatpush1.bf16.msra.mxu0 0
    %983 = vmatprep.subr.bf16.mxu0 0
    %984 = vmatpush1.bf16.msra.mxu0 0
    %985 = vmatprep.subr.bf16.mxu0 0
    %986 = vmatpush1.bf16.msra.mxu0 0
    %987 = vmatprep.subr.bf16.mxu0 0
    %988 = vmatpush1.bf16.msra.mxu0 0
    %989 = vmatprep.subr.bf16.mxu0 0
    %990 = vmatpush1.bf16.msra.mxu0 0
    %991 = vmatprep.subr.bf16.mxu0 0
    %992 = vmatpush1.bf16.msra.mxu0 0
    %993 = vmatprep.subr.bf16.mxu0 0
    %994 = vmatpush1.bf16.msra.mxu0 0
    %995 = vmatprep.subr.bf16.mxu0 0
    %996 = vmatpush1.bf16.msra.mxu0 0
    %997 = vmatprep.subr.bf16.mxu0 0
    %998 = vmatpush1.bf16.msra.mxu0 0
    %999 = vmatprep.subr.bf16.mxu0 0
    %1000 = vmatpush1.bf16.msra.mxu0 0
    %1001 = vmatprep.subr.bf16.mxu0 0
    %1002 = vmatpush1.bf16.msra.mxu0 0
    %1003 = vmatprep.subr.bf16.mxu0 0
    %1004 = vmatpush1.bf16.msra.mxu0 0
    %1005 = vmatprep.subr.bf16.mxu0 0
    %1006 = vmatpush1.bf16.msra.mxu0 0
    %1007 = vmatprep.mubr.bf16.mxu0 0
    %1008 = vmatmul.mubr.bf16.gmra.mrb[0].mxu0 %v970
    %v1009 = vpop.f32.mrb[0].mxu0
    %v1010 = vadd.f32 %v963, %v1009
    %v1011 = vpop.f32.mrb[0].mxu0
    %v1012 = vpop.f32.mrb[0].mxu0
    %v1013 = vadd.f32 %v966, %v1012
    %v1014 = vpop.f32.mrb[0].mxu0
    %1015 = vdwg.mxu0
    %1016 = vrot.lane.b32.xlu0 %v474, 112
    %v1017 = vpop.permute.xlu0 %1016
    %1018 = vrot.lane.b32.xlu0 %v476, 112
    %v1019 = vpop.permute.xlu0 %1018
    %v1021 = vsel %vm480, %v1017, 0
    %v1024 = vsel %vm480, %v1019, 0
    %1026 = vmatprep.subr.bf16.mxu0 0
    %1027 = vmatpush1.bf16.xpose.msra.mxu0 %v1024
    %1028 = vmatprep.subr.bf16.mxu0 0
    %1029 = vmatpush1.bf16.xpose.msra.mxu0 0
    %1030 = vmatprep.subr.bf16.mxu0 0
    %1031 = vmatpush1.bf16.xpose.msra.mxu0 0
    %1032 = vmatprep.subr.bf16.mxu0 0
    %1033 = vmatpush1.bf16.xpose.msra.mxu0 0
    %1034 = vmatprep.subr.bf16.mxu0 0
    %1035 = vmatpush1.bf16.xpose.msra.mxu0 0
    %1036 = vmatprep.subr.bf16.mxu0 0
    %1037 = vmatpush1.bf16.xpose.msra.mxu0 0
    %1038 = vmatprep.subr.bf16.mxu0 0
    %1039 = vmatpush1.bf16.xpose.msra.mxu0 0
    %1040 = vmatprep.subr.bf16.mxu0 0
    %1041 = vmatpush1.bf16.xpose.msra.mxu0 0
    %1042 = vmatprep.subr.bf16.mxu0 0
    %1043 = vmatpush1.bf16.xpose.msra.mxu0 0
    %1044 = vmatprep.subr.bf16.mxu0 0
    %1045 = vmatpush1.bf16.xpose.msra.mxu0 0
    %1046 = vmatprep.subr.bf16.mxu0 0
    %1047 = vmatpush1.bf16.xpose.msra.mxu0 0
    %1048 = vmatprep.subr.bf16.mxu0 0
    %1049 = vmatpush1.bf16.xpose.msra.mxu0 0
    %1050 = vmatprep.subr.bf16.mxu0 0
    %1051 = vmatpush1.bf16.xpose.msra.mxu0 0
    %1052 = vmatprep.subr.bf16.mxu0 0
    %1053 = vmatpush1.bf16.xpose.msra.mxu0 0
    %1054 = vmatprep.subr.bf16.mxu0 0
    %1055 = vmatpush1.bf16.xpose.msra.mxu0 0
    %1056 = vmatprep.subr.bf16.mxu0 0
    %1057 = vmatpush1.bf16.xpose.msra.mxu0 0
    %1058 = vmatprep.mubr.bf16.mxu0 0
    %1059 = vmatmul.mubr.bf16.gmra.mrb[0].mxu0 %v1021
    %v1060 = vpop.f32.mrb[0].mxu0
    %v1061 = vadd.f32 0.0, %v1060
    %v1062 = vpop.f32.mrb[0].mxu0
    %v1063 = vpop.f32.mrb[0].mxu0
    %v1064 = vpop.f32.mrb[0].mxu0
    %1065 = vdwg.mxu0
    %1066 = vrot.lane.b32.xlu0 %v475, 112
    %v1067 = vpop.permute.xlu0 %1066
    %1068 = vrot.lane.b32.xlu0 %v477, 112
    %v1069 = vpop.permute.xlu0 %1068
    %v1071 = vsel %vm480, %v1067, 0
    %v1074 = vsel %vm480, %v1069, 0
    %1076 = vmatprep.subr.bf16.mxu0 0
    %1077 = vmatpush1.bf16.xpose.msra.mxu0 %v1074
    %1078 = vmatprep.subr.bf16.mxu0 0
    %1079 = vmatpush1.bf16.xpose.msra.mxu0 0
    %1080 = vmatprep.subr.bf16.mxu0 0
    %1081 = vmatpush1.bf16.xpose.msra.mxu0 0
    %1082 = vmatprep.subr.bf16.mxu0 0
    %1083 = vmatpush1.bf16.xpose.msra.mxu0 0
    %1084 = vmatprep.subr.bf16.mxu0 0
    %1085 = vmatpush1.bf16.xpose.msra.mxu0 0
    %1086 = vmatprep.subr.bf16.mxu0 0
    %1087 = vmatpush1.bf16.xpose.msra.mxu0 0
    %1088 = vmatprep.subr.bf16.mxu0 0
    %1089 = vmatpush1.bf16.xpose.msra.mxu0 0
    %1090 = vmatprep.subr.bf16.mxu0 0
    %1091 = vmatpush1.bf16.xpose.msra.mxu0 0
    %1092 = vmatprep.subr.bf16.mxu0 0
    %1093 = vmatpush1.bf16.xpose.msra.mxu0 0
    %1094 = vmatprep.subr.bf16.mxu0 0
    %1095 = vmatpush1.bf16.xpose.msra.mxu0 0
    %1096 = vmatprep.subr.bf16.mxu0 0
    %1097 = vmatpush1.bf16.xpose.msra.mxu0 0
    %1098 = vmatprep.subr.bf16.mxu0 0
    %1099 = vmatpush1.bf16.xpose.msra.mxu0 0
    %1100 = vmatprep.subr.bf16.mxu0 0
    %1101 = vmatpush1.bf16.xpose.msra.mxu0 0
    %1102 = vmatprep.subr.bf16.mxu0 0
    %1103 = vmatpush1.bf16.xpose.msra.mxu0 0
    %1104 = vmatprep.subr.bf16.mxu0 0
    %1105 = vmatpush1.bf16.xpose.msra.mxu0 0
    %1106 = vmatprep.subr.bf16.mxu0 0
    %1107 = vmatpush1.bf16.xpose.msra.mxu0 0
    %1108 = vmatprep.mubr.bf16.mxu0 0
    %1109 = vmatmul.mubr.bf16.gmra.mrb[0].mxu0 %v1071
    %v1110 = vpop.f32.mrb[0].mxu0
    %v1111 = vadd.f32 0.0, %v1110
    %v1112 = vpop.f32.mrb[0].mxu0
    %v1113 = vpop.f32.mrb[0].mxu0
    %v1114 = vpop.f32.mrb[0].mxu0
    %1115 = vdwg.mxu0
    %v1116 = vsel %vm480, %v1061, -inf
    %1117 = vmax.xlane.f32.xlu0 %v1116
    %v1118 = vpop.xlane.xlu0 %1117
    %v1119 = vsel %vm480, %v1111, -inf
    %1120 = vmax.xlane.f32.xlu0 %v1119
    %v1121 = vpop.xlane.xlu0 %1120
    %v1122 = vsub.f32 %v1061, %v1118
    %v1123 = vsub.f32 %v1111, %v1121
    %v1124 = vmul.f32 %v1122, 1.442695
    %v1125 = vpow.pop %v1124
    %v1126 = vmul.f32 %v1123, 1.442695
    %v1127 = vpow.pop %v1126
    %v1128 = vsel %vm480, %v1125, 0.0
    %1129 = vadd.xlane.f32.xlu0 %v1128
    %v1130 = vpop.xlane.xlu0 %1129
    %v1131 = vsel %vm480, %v1127, 0.0
    %1132 = vadd.xlane.f32.xlu0 %v1131
    %v1133 = vpop.xlane.xlu0 %1132
    %v1134 = vrcp.pop %v1130
    %v1135 = vrcp.pop %v1133
    %v1136 = vmul.f32 %v1125, %v1134
    %v1137 = vmul.f32 %v1127, %v1135
    %v1138 = vadd.f32 %v819, %v1136
    %v1139 = vadd.f32 %v820, %v1137
    %v1140 = vpack.c.bf16 %v1136, %v1136
    %v1141 = vpack.c.bf16 %v1137, %v1137
    %1142 = vrot.lane.b32.xlu0 %v478, 112
    %v1143 = vpop.permute.xlu0 %1142
    %v1145 = vsel %vm480, %v1140, 0
    %v1148 = vsel %vm602, %v1143, 0
    %1150 = vmatprep.subr.bf16.mxu0 0
    %1151 = vmatpush1.bf16.msra.mxu0 %v1148
    %1152 = vmatprep.subr.bf16.mxu0 0
    %1153 = vmatpush1.bf16.msra.mxu0 0
    %1154 = vmatprep.subr.bf16.mxu0 0
    %1155 = vmatpush1.bf16.msra.mxu0 0
    %1156 = vmatprep.subr.bf16.mxu0 0
    %1157 = vmatpush1.bf16.msra.mxu0 0
    %1158 = vmatprep.subr.bf16.mxu0 0
    %1159 = vmatpush1.bf16.msra.mxu0 0
    %1160 = vmatprep.subr.bf16.mxu0 0
    %1161 = vmatpush1.bf16.msra.mxu0 0
    %1162 = vmatprep.subr.bf16.mxu0 0
    %1163 = vmatpush1.bf16.msra.mxu0 0
    %1164 = vmatprep.subr.bf16.mxu0 0
    %1165 = vmatpush1.bf16.msra.mxu0 0
    %1166 = vmatprep.subr.bf16.mxu0 0
    %1167 = vmatpush1.bf16.msra.mxu0 0
    %1168 = vmatprep.subr.bf16.mxu0 0
    %1169 = vmatpush1.bf16.msra.mxu0 0
    %1170 = vmatprep.subr.bf16.mxu0 0
    %1171 = vmatpush1.bf16.msra.mxu0 0
    %1172 = vmatprep.subr.bf16.mxu0 0
    %1173 = vmatpush1.bf16.msra.mxu0 0
    %1174 = vmatprep.subr.bf16.mxu0 0
    %1175 = vmatpush1.bf16.msra.mxu0 0
    %1176 = vmatprep.subr.bf16.mxu0 0
    %1177 = vmatpush1.bf16.msra.mxu0 0
    %1178 = vmatprep.subr.bf16.mxu0 0
    %1179 = vmatpush1.bf16.msra.mxu0 0
    %1180 = vmatprep.subr.bf16.mxu0 0
    %1181 = vmatpush1.bf16.msra.mxu0 0
    %1182 = vmatprep.mubr.bf16.mxu0 0
    %1183 = vmatmul.mubr.bf16.gmra.mrb[0].mxu0 %v1145
    %v1184 = vpop.f32.mrb[0].mxu0
    %v1185 = vadd.f32 0.0, %v1184
    %v1186 = vpop.f32.mrb[0].mxu0
    %v1187 = vpop.f32.mrb[0].mxu0
    %v1188 = vpop.f32.mrb[0].mxu0
    %1189 = vdwg.mxu0
    %1190 = vrot.lane.b32.xlu0 %v479, 112
    %v1191 = vpop.permute.xlu0 %1190
    %v1193 = vsel %vm480, %v1141, 0
    %v1196 = vsel %vm602, %v1191, 0
    %1198 = vmatprep.subr.bf16.mxu0 0
    %1199 = vmatpush1.bf16.msra.mxu0 %v1196
    %1200 = vmatprep.subr.bf16.mxu0 0
    %1201 = vmatpush1.bf16.msra.mxu0 0
    %1202 = vmatprep.subr.bf16.mxu0 0
    %1203 = vmatpush1.bf16.msra.mxu0 0
    %1204 = vmatprep.subr.bf16.mxu0 0
    %1205 = vmatpush1.bf16.msra.mxu0 0
    %1206 = vmatprep.subr.bf16.mxu0 0
    %1207 = vmatpush1.bf16.msra.mxu0 0
    %1208 = vmatprep.subr.bf16.mxu0 0
    %1209 = vmatpush1.bf16.msra.mxu0 0
    %1210 = vmatprep.subr.bf16.mxu0 0
    %1211 = vmatpush1.bf16.msra.mxu0 0
    %1212 = vmatprep.subr.bf16.mxu0 0
    %1213 = vmatpush1.bf16.msra.mxu0 0
    %1214 = vmatprep.subr.bf16.mxu0 0
    %1215 = vmatpush1.bf16.msra.mxu0 0
    %1216 = vmatprep.subr.bf16.mxu0 0
    %1217 = vmatpush1.bf16.msra.mxu0 0
    %1218 = vmatprep.subr.bf16.mxu0 0
    %1219 = vmatpush1.bf16.msra.mxu0 0
    %1220 = vmatprep.subr.bf16.mxu0 0
    %1221 = vmatpush1.bf16.msra.mxu0 0
    %1222 = vmatprep.subr.bf16.mxu0 0
    %1223 = vmatpush1.bf16.msra.mxu0 0
    %1224 = vmatprep.subr.bf16.mxu0 0
    %1225 = vmatpush1.bf16.msra.mxu0 0
    %1226 = vmatprep.subr.bf16.mxu0 0
    %1227 = vmatpush1.bf16.msra.mxu0 0
    %1228 = vmatprep.subr.bf16.mxu0 0
    %1229 = vmatpush1.bf16.msra.mxu0 0
    %1230 = vmatprep.mubr.bf16.mxu0 0
    %1231 = vmatmul.mubr.bf16.gmra.mrb[0].mxu0 %v1193
    %v1232 = vpop.f32.mrb[0].mxu0
    %v1233 = vadd.f32 0.0, %v1232
    %v1234 = vpop.f32.mrb[0].mxu0
    %v1235 = vpop.f32.mrb[0].mxu0
    %v1236 = vpop.f32.mrb[0].mxu0
    %1237 = vdwg.mxu0
    %v1238 = vpack.c.bf16 %v1233, %v1185
    %v1240 = vsel %vm480, %v1238, 0
    %v1243 = vsel %vm602, %v472, 0
    %1245 = vmatprep.subr.bf16.mxu0 0
    %1246 = vmatpush1.bf16.msra.mxu0 %v1243
    %1247 = vmatprep.subr.bf16.mxu0 0
    %1248 = vmatpush1.bf16.msra.mxu0 0
    %1249 = vmatprep.subr.bf16.mxu0 0
    %1250 = vmatpush1.bf16.msra.mxu0 0
    %1251 = vmatprep.subr.bf16.mxu0 0
    %1252 = vmatpush1.bf16.msra.mxu0 0
    %1253 = vmatprep.subr.bf16.mxu0 0
    %1254 = vmatpush1.bf16.msra.mxu0 0
    %1255 = vmatprep.subr.bf16.mxu0 0
    %1256 = vmatpush1.bf16.msra.mxu0 0
    %1257 = vmatprep.subr.bf16.mxu0 0
    %1258 = vmatpush1.bf16.msra.mxu0 0
    %1259 = vmatprep.subr.bf16.mxu0 0
    %1260 = vmatpush1.bf16.msra.mxu0 0
    %1261 = vmatprep.subr.bf16.mxu0 0
    %1262 = vmatpush1.bf16.msra.mxu0 0
    %1263 = vmatprep.subr.bf16.mxu0 0
    %1264 = vmatpush1.bf16.msra.mxu0 0
    %1265 = vmatprep.subr.bf16.mxu0 0
    %1266 = vmatpush1.bf16.msra.mxu0 0
    %1267 = vmatprep.subr.bf16.mxu0 0
    %1268 = vmatpush1.bf16.msra.mxu0 0
    %1269 = vmatprep.subr.bf16.mxu0 0
    %1270 = vmatpush1.bf16.msra.mxu0 0
    %1271 = vmatprep.subr.bf16.mxu0 0
    %1272 = vmatpush1.bf16.msra.mxu0 0
    %1273 = vmatprep.subr.bf16.mxu0 0
    %1274 = vmatpush1.bf16.msra.mxu0 0
    %1275 = vmatprep.subr.bf16.mxu0 0
    %1276 = vmatpush1.bf16.msra.mxu0 0
    %1277 = vmatprep.mubr.bf16.mxu0 0
    %1278 = vmatmul.mubr.bf16.gmra.mrb[0].mxu0 %v1240
    %v1279 = vpop.f32.mrb[0].mxu0
    %v1280 = vadd.f32 0.0, %v1279
    %v1281 = vpop.f32.mrb[0].mxu0
    %v1282 = vpop.f32.mrb[0].mxu0
    %v1283 = vadd.f32 0.0, %v1282
    %v1284 = vpop.f32.mrb[0].mxu0
    %1285 = vdwg.mxu0
    %v1286 = vadd.f32 %v1010, %v1280
    %v1287 = vadd.f32 %v1013, %v1283
    %1288 = vrot.lane.b32.xlu0 %v474, 104
    %v1289 = vpop.permute.xlu0 %1288
    %1290 = vrot.lane.b32.xlu0 %v476, 104
    %v1291 = vpop.permute.xlu0 %1290
    %v1293 = vsel %vm480, %v1289, 0
    %v1296 = vsel %vm480, %v1291, 0
    %1298 = vmatprep.subr.bf16.mxu0 0
    %1299 = vmatpush1.bf16.xpose.msra.mxu0 %v1296
    %1300 = vmatprep.subr.bf16.mxu0 0
    %1301 = vmatpush1.bf16.xpose.msra.mxu0 0
    %1302 = vmatprep.subr.bf16.mxu0 0
    %1303 = vmatpush1.bf16.xpose.msra.mxu0 0
    %1304 = vmatprep.subr.bf16.mxu0 0
    %1305 = vmatpush1.bf16.xpose.msra.mxu0 0
    %1306 = vmatprep.subr.bf16.mxu0 0
    %1307 = vmatpush1.bf16.xpose.msra.mxu0 0
    %1308 = vmatprep.subr.bf16.mxu0 0
    %1309 = vmatpush1.bf16.xpose.msra.mxu0 0
    %1310 = vmatprep.subr.bf16.mxu0 0
    %1311 = vmatpush1.bf16.xpose.msra.mxu0 0
    %1312 = vmatprep.subr.bf16.mxu0 0
    %1313 = vmatpush1.bf16.xpose.msra.mxu0 0
    %1314 = vmatprep.subr.bf16.mxu0 0
    %1315 = vmatpush1.bf16.xpose.msra.mxu0 0
    %1316 = vmatprep.subr.bf16.mxu0 0
    %1317 = vmatpush1.bf16.xpose.msra.mxu0 0
    %1318 = vmatprep.subr.bf16.mxu0 0
    %1319 = vmatpush1.bf16.xpose.msra.mxu0 0
    %1320 = vmatprep.subr.bf16.mxu0 0
    %1321 = vmatpush1.bf16.xpose.msra.mxu0 0
    %1322 = vmatprep.subr.bf16.mxu0 0
    %1323 = vmatpush1.bf16.xpose.msra.mxu0 0
    %1324 = vmatprep.subr.bf16.mxu0 0
    %1325 = vmatpush1.bf16.xpose.msra.mxu0 0
    %1326 = vmatprep.subr.bf16.mxu0 0
    %1327 = vmatpush1.bf16.xpose.msra.mxu0 0
    %1328 = vmatprep.subr.bf16.mxu0 0
    %1329 = vmatpush1.bf16.xpose.msra.mxu0 0
    %1330 = vmatprep.mubr.bf16.mxu0 0
    %1331 = vmatmul.mubr.bf16.gmra.mrb[0].mxu0 %v1293
    %v1332 = vpop.f32.mrb[0].mxu0
    %v1333 = vadd.f32 0.0, %v1332
    %v1334 = vpop.f32.mrb[0].mxu0
    %v1335 = vpop.f32.mrb[0].mxu0
    %v1336 = vpop.f32.mrb[0].mxu0
    %1337 = vdwg.mxu0
    %1338 = vrot.lane.b32.xlu0 %v475, 104
    %v1339 = vpop.permute.xlu0 %1338
    %1340 = vrot.lane.b32.xlu0 %v477, 104
    %v1341 = vpop.permute.xlu0 %1340
    %v1343 = vsel %vm480, %v1339, 0
    %v1346 = vsel %vm480, %v1341, 0
    %1348 = vmatprep.subr.bf16.mxu0 0
    %1349 = vmatpush1.bf16.xpose.msra.mxu0 %v1346
    %1350 = vmatprep.subr.bf16.mxu0 0
    %1351 = vmatpush1.bf16.xpose.msra.mxu0 0
    %1352 = vmatprep.subr.bf16.mxu0 0
    %1353 = vmatpush1.bf16.xpose.msra.mxu0 0
    %1354 = vmatprep.subr.bf16.mxu0 0
    %1355 = vmatpush1.bf16.xpose.msra.mxu0 0
    %1356 = vmatprep.subr.bf16.mxu0 0
    %1357 = vmatpush1.bf16.xpose.msra.mxu0 0
    %1358 = vmatprep.subr.bf16.mxu0 0
    %1359 = vmatpush1.bf16.xpose.msra.mxu0 0
    %1360 = vmatprep.subr.bf16.mxu0 0
    %1361 = vmatpush1.bf16.xpose.msra.mxu0 0
    %1362 = vmatprep.subr.bf16.mxu0 0
    %1363 = vmatpush1.bf16.xpose.msra.mxu0 0
    %1364 = vmatprep.subr.bf16.mxu0 0
    %1365 = vmatpush1.bf16.xpose.msra.mxu0 0
    %1366 = vmatprep.subr.bf16.mxu0 0
    %1367 = vmatpush1.bf16.xpose.msra.mxu0 0
    %1368 = vmatprep.subr.bf16.mxu0 0
    %1369 = vmatpush1.bf16.xpose.msra.mxu0 0
    %1370 = vmatprep.subr.bf16.mxu0 0
    %1371 = vmatpush1.bf16.xpose.msra.mxu0 0
    %1372 = vmatprep.subr.bf16.mxu0 0
    %1373 = vmatpush1.bf16.xpose.msra.mxu0 0
    %1374 = vmatprep.subr.bf16.mxu0 0
    %1375 = vmatpush1.bf16.xpose.msra.mxu0 0
    %1376 = vmatprep.subr.bf16.mxu0 0
    %1377 = vmatpush1.bf16.xpose.msra.mxu0 0
    %1378 = vmatprep.subr.bf16.mxu0 0
    %1379 = vmatpush1.bf16.xpose.msra.mxu0 0
    %1380 = vmatprep.mubr.bf16.mxu0 0
    %1381 = vmatmul.mubr.bf16.gmra.mrb[0].mxu0 %v1343
    %v1382 = vpop.f32.mrb[0].mxu0
    %v1383 = vadd.f32 0.0, %v1382
    %v1384 = vpop.f32.mrb[0].mxu0
    %v1385 = vpop.f32.mrb[0].mxu0
    %v1386 = vpop.f32.mrb[0].mxu0
    %1387 = vdwg.mxu0
    %v1388 = vsel %vm480, %v1333, -inf
    %1389 = vmax.xlane.f32.xlu0 %v1388
    %v1390 = vpop.xlane.xlu0 %1389
    %v1391 = vsel %vm480, %v1383, -inf
    %1392 = vmax.xlane.f32.xlu0 %v1391
    %v1393 = vpop.xlane.xlu0 %1392
    %v1394 = vsub.f32 %v1333, %v1390
    %v1395 = vsub.f32 %v1383, %v1393
    %v1396 = vmul.f32 %v1394, 1.442695
    %v1397 = vpow.pop %v1396
    %v1398 = vmul.f32 %v1395, 1.442695
    %v1399 = vpow.pop %v1398
    %v1400 = vsel %vm480, %v1397, 0.0
    %1401 = vadd.xlane.f32.xlu0 %v1400
    %v1402 = vpop.xlane.xlu0 %1401
    %v1403 = vsel %vm480, %v1399, 0.0
    %1404 = vadd.xlane.f32.xlu0 %v1403
    %v1405 = vpop.xlane.xlu0 %1404
    %v1406 = vrcp.pop %v1402
    %v1407 = vrcp.pop %v1405
    %v1408 = vmul.f32 %v1397, %v1406
    %v1409 = vmul.f32 %v1399, %v1407
    %v1410 = vadd.f32 %v1138, %v1408
    %v1411 = vadd.f32 %v1139, %v1409
    %v1412 = vpack.c.bf16 %v1408, %v1408
    %v1413 = vpack.c.bf16 %v1409, %v1409
    %1414 = vrot.lane.b32.xlu0 %v478, 104
    %v1415 = vpop.permute.xlu0 %1414
    %v1417 = vsel %vm480, %v1412, 0
    %v1420 = vsel %vm602, %v1415, 0
    %1422 = vmatprep.subr.bf16.mxu0 0
    %1423 = vmatpush1.bf16.msra.mxu0 %v1420
    %1424 = vmatprep.subr.bf16.mxu0 0
    %1425 = vmatpush1.bf16.msra.mxu0 0
    %1426 = vmatprep.subr.bf16.mxu0 0
    %1427 = vmatpush1.bf16.msra.mxu0 0
    %1428 = vmatprep.subr.bf16.mxu0 0
    %1429 = vmatpush1.bf16.msra.mxu0 0
    %1430 = vmatprep.subr.bf16.mxu0 0
    %1431 = vmatpush1.bf16.msra.mxu0 0
    %1432 = vmatprep.subr.bf16.mxu0 0
    %1433 = vmatpush1.bf16.msra.mxu0 0
    %1434 = vmatprep.subr.bf16.mxu0 0
    %1435 = vmatpush1.bf16.msra.mxu0 0
    %1436 = vmatprep.subr.bf16.mxu0 0
    %1437 = vmatpush1.bf16.msra.mxu0 0
    %1438 = vmatprep.subr.bf16.mxu0 0
    %1439 = vmatpush1.bf16.msra.mxu0 0
    %1440 = vmatprep.subr.bf16.mxu0 0
    %1441 = vmatpush1.bf16.msra.mxu0 0
    %1442 = vmatprep.subr.bf16.mxu0 0
    %1443 = vmatpush1.bf16.msra.mxu0 0
    %1444 = vmatprep.subr.bf16.mxu0 0
    %1445 = vmatpush1.bf16.msra.mxu0 0
    %1446 = vmatprep.subr.bf16.mxu0 0
    %1447 = vmatpush1.bf16.msra.mxu0 0
    %1448 = vmatprep.subr.bf16.mxu0 0
    %1449 = vmatpush1.bf16.msra.mxu0 0
    %1450 = vmatprep.subr.bf16.mxu0 0
    %1451 = vmatpush1.bf16.msra.mxu0 0
    %1452 = vmatprep.subr.bf16.mxu0 0
    %1453 = vmatpush1.bf16.msra.mxu0 0
    %1454 = vmatprep.mubr.bf16.mxu0 0
    %1455 = vmatmul.mubr.bf16.gmra.mrb[0].mxu0 %v1417
    %v1456 = vpop.f32.mrb[0].mxu0
    %v1457 = vadd.f32 0.0, %v1456
    %v1458 = vpop.f32.mrb[0].mxu0
    %v1459 = vpop.f32.mrb[0].mxu0
    %v1460 = vpop.f32.mrb[0].mxu0
    %1461 = vdwg.mxu0
    %1462 = vrot.lane.b32.xlu0 %v479, 104
    %v1463 = vpop.permute.xlu0 %1462
    %v1465 = vsel %vm480, %v1413, 0
    %v1468 = vsel %vm602, %v1463, 0
    %1470 = vmatprep.subr.bf16.mxu0 0
    %1471 = vmatpush1.bf16.msra.mxu0 %v1468
    %1472 = vmatprep.subr.bf16.mxu0 0
    %1473 = vmatpush1.bf16.msra.mxu0 0
    %1474 = vmatprep.subr.bf16.mxu0 0
    %1475 = vmatpush1.bf16.msra.mxu0 0
    %1476 = vmatprep.subr.bf16.mxu0 0
    %1477 = vmatpush1.bf16.msra.mxu0 0
    %1478 = vmatprep.subr.bf16.mxu0 0
    %1479 = vmatpush1.bf16.msra.mxu0 0
    %1480 = vmatprep.subr.bf16.mxu0 0
    %1481 = vmatpush1.bf16.msra.mxu0 0
    %1482 = vmatprep.subr.bf16.mxu0 0
    %1483 = vmatpush1.bf16.msra.mxu0 0
    %1484 = vmatprep.subr.bf16.mxu0 0
    %1485 = vmatpush1.bf16.msra.mxu0 0
    %1486 = vmatprep.subr.bf16.mxu0 0
    %1487 = vmatpush1.bf16.msra.mxu0 0
    %1488 = vmatprep.subr.bf16.mxu0 0
    %1489 = vmatpush1.bf16.msra.mxu0 0
    %1490 = vmatprep.subr.bf16.mxu0 0
    %1491 = vmatpush1.bf16.msra.mxu0 0
    %1492 = vmatprep.subr.bf16.mxu0 0
    %1493 = vmatpush1.bf16.msra.mxu0 0
    %1494 = vmatprep.subr.bf16.mxu0 0
    %1495 = vmatpush1.bf16.msra.mxu0 0
    %1496 = vmatprep.subr.bf16.mxu0 0
    %1497 = vmatpush1.bf16.msra.mxu0 0
    %1498 = vmatprep.subr.bf16.mxu0 0
    %1499 = vmatpush1.bf16.msra.mxu0 0
    %1500 = vmatprep.subr.bf16.mxu0 0
    %1501 = vmatpush1.bf16.msra.mxu0 0
    %1502 = vmatprep.mubr.bf16.mxu0 0
    %1503 = vmatmul.mubr.bf16.gmra.mrb[0].mxu0 %v1465
    %v1504 = vpop.f32.mrb[0].mxu0
    %v1505 = vadd.f32 0.0, %v1504
    %v1506 = vpop.f32.mrb[0].mxu0
    %v1507 = vpop.f32.mrb[0].mxu0
    %v1508 = vpop.f32.mrb[0].mxu0
    %1509 = vdwg.mxu0
    %v1510 = vpack.c.bf16 %v1505, %v1457
    %v1512 = vsel %vm480, %v1510, 0
    %v1515 = vsel %vm602, %v473, 0
    %1517 = vmatprep.subr.bf16.mxu0 0
    %1518 = vmatpush1.bf16.msra.mxu0 %v1515
    %1519 = vmatprep.subr.bf16.mxu0 0
    %1520 = vmatpush1.bf16.msra.mxu0 0
    %1521 = vmatprep.subr.bf16.mxu0 0
    %1522 = vmatpush1.bf16.msra.mxu0 0
    %1523 = vmatprep.subr.bf16.mxu0 0
    %1524 = vmatpush1.bf16.msra.mxu0 0
    %1525 = vmatprep.subr.bf16.mxu0 0
    %1526 = vmatpush1.bf16.msra.mxu0 0
    %1527 = vmatprep.subr.bf16.mxu0 0
    %1528 = vmatpush1.bf16.msra.mxu0 0
    %1529 = vmatprep.subr.bf16.mxu0 0
    %1530 = vmatpush1.bf16.msra.mxu0 0
    %1531 = vmatprep.subr.bf16.mxu0 0
    %1532 = vmatpush1.bf16.msra.mxu0 0
    %1533 = vmatprep.subr.bf16.mxu0 0
    %1534 = vmatpush1.bf16.msra.mxu0 0
    %1535 = vmatprep.subr.bf16.mxu0 0
    %1536 = vmatpush1.bf16.msra.mxu0 0
    %1537 = vmatprep.subr.bf16.mxu0 0
    %1538 = vmatpush1.bf16.msra.mxu0 0
    %1539 = vmatprep.subr.bf16.mxu0 0
    %1540 = vmatpush1.bf16.msra.mxu0 0
    %1541 = vmatprep.subr.bf16.mxu0 0
    %1542 = vmatpush1.bf16.msra.mxu0 0
    %1543 = vmatprep.subr.bf16.mxu0 0
    %1544 = vmatpush1.bf16.msra.mxu0 0
    %1545 = vmatprep.subr.bf16.mxu0 0
    %1546 = vmatpush1.bf16.msra.mxu0 0
    %1547 = vmatprep.subr.bf16.mxu0 0
    %1548 = vmatpush1.bf16.msra.mxu0 0
    %1549 = vmatprep.mubr.bf16.mxu0 0
    %1550 = vmatmul.mubr.bf16.gmra.mrb[0].mxu0 %v1512
    %v1551 = vpop.f32.mrb[0].mxu0
    %v1552 = vadd.f32 0.0, %v1551
    %v1553 = vpop.f32.mrb[0].mxu0
    %v1554 = vpop.f32.mrb[0].mxu0
    %v1555 = vadd.f32 0.0, %v1554
    %v1556 = vpop.f32.mrb[0].mxu0
    %1557 = vdwg.mxu0
    %v1558 = vadd.f32 %v1286, %v1552
    %v1559 = vadd.f32 %v1287, %v1555
    %v1560 = vmul.f32 %v1410, 0.25
    %v1561 = vmul.f32 %v1411, 0.25
    %1562 = vst.msk [vmem:[#allocation30] sm:$0xff] %vm480, %v1560
    %1563 = vst.msk [vmem:[#allocation30 + $0x8] sm:$0xff] %vm480, %v1561
    %v1564 = vld [vmem:[#allocation16] sm:$0x1]
    %v1566 = vlaneseq
    %v1567 = vshrl.u32 %v1566, 7
    %v1568 = vsub.s32 0, %v1567
    %v1569 = vrot.slane %v1564, %v1568
    %v1571 = vadd.f32 %v1558, %v1569
    %v1572 = vadd.f32 %v1559, %v1569
    %v1573 = vadd.f32 %v271, %v1571
    %v1574 = vadd.f32 %v272, %v1572
    %v1575 = vsel %vm297, %v1573, 0.0
    %1576 = vadd.xlane.f32.xlu0 %v1575
    %v1577 = vpop.xlane.xlu0 %1576
    %v1578 = vsel %vm297, %v1574, 0.0
    %1579 = vadd.xlane.f32.xlu0 %v1578
    %v1580 = vpop.xlane.xlu0 %1579
    %v1581 = vrcp.pop 32.0
    %v1582 = vmul.f32 %v1577, %v1581
    %v1583 = vmul.f32 %v1580, %v1581
    %v1584 = vsub.f32 %v1573, %v1582
    %v1585 = vsub.f32 %v1574, %v1583
    %v1586 = vmul.f32 %v1584, %v1584
    %v1587 = vmul.f32 %v1585, %v1585
    %v1588 = vsel %vm297, %v1586, 0.0
    %1589 = vadd.xlane.f32.xlu0 %v1588
    %v1590 = vpop.xlane.xlu0 %1589
    %v1591 = vsel %vm297, %v1587, 0.0
    %1592 = vadd.xlane.f32.xlu0 %v1591
    %v1593 = vpop.xlane.xlu0 %1592
    %v1594 = vmul.f32 %v1590, %v1581
    %v1595 = vmul.f32 %v1593, %v1581
    %v1596 = vadd.f32 %v1594, 1e-05
    %v1597 = vadd.f32 %v1595, 1e-05
    %v1598 = vrsqrt.pop %v1596
    %v1599 = vrsqrt.pop %v1597
    %v1600 = vmul.f32 %v1584, %v1598
    %v1601 = vmul.f32 %v1585, %v1599
    %v1602 = vld [vmem:[#allocation23] sm:$0x1]
    %v1604 = vlaneseq
    %v1605 = vshrl.u32 %v1604, 7
    %v1606 = vsub.s32 0, %v1605
    %v1607 = vrot.slane %v1602, %v1606
    %v1609 = vmul.f32 %v1600, %v1607
    %v1610 = vmul.f32 %v1601, %v1607
    %v1611 = vld [vmem:[#allocation25] sm:$0x1]
    %v1613 = vlaneseq
    %v1614 = vshrl.u32 %v1613, 7
    %v1615 = vsub.s32 0, %v1614
    %v1616 = vrot.slane %v1611, %v1615
    %v1618 = vadd.f32 %v1609, %v1616
    %v1619 = vadd.f32 %v1610, %v1616
    %v1620 = vpack.c.bf16 %v1619, %v1618
    %v1621 = vld [vmem:[#allocation17] sm:$0xf]
    %v1622 = vld [vmem:[#allocation17 + $0x4] sm:$0xf]
    %v1623 = vld [vmem:[#allocation17 + $0x8] sm:$0xf]
    %v1624 = vld [vmem:[#allocation17 + $0xc] sm:$0xf]
    %v1625 = vld [vmem:[#allocation19] sm:$0x1]
    %v1627 = vlaneseq
    %v1628 = vshrl.u32 %v1627, 7
    %v1629 = vsub.s32 0, %v1628
    %v1630 = vrot.slane %v1625, %v1629
    %v1636 = vunpack.c.l.b16 %v1621
    %v1637 = vunpack.c.l.b16 %v1622
    %v1638 = vunpack.c.l.b16 %v1623
    %v1639 = vunpack.c.l.b16 %v1624
    %v1640 = vpack.c.b16 %v1637, %v1636
    %v1641 = vpack.c.b16 %v1639, %v1638
    %v1645 = vsel %vm297, %v1620, 0
    %1647 = vmatprep.subr.bf16.mxu0 0
    %1648 = vmatpush1.bf16.msra.mxu0 %v1640
    %1649 = vmatprep.subr.bf16.mxu0 0
    %1650 = vmatpush1.bf16.msra.mxu0 %v1641
    %1651 = vmatprep.subr.bf16.mxu0 0
    %1652 = vmatpush1.bf16.msra.mxu0 0
    %1653 = vmatprep.subr.bf16.mxu0 0
    %1654 = vmatpush1.bf16.msra.mxu0 0
    %1655 = vmatprep.subr.bf16.mxu0 0
    %1656 = vmatpush1.bf16.msra.mxu0 0
    %1657 = vmatprep.subr.bf16.mxu0 0
    %1658 = vmatpush1.bf16.msra.mxu0 0
    %1659 = vmatprep.subr.bf16.mxu0 0
    %1660 = vmatpush1.bf16.msra.mxu0 0
    %1661 = vmatprep.subr.bf16.mxu0 0
    %1662 = vmatpush1.bf16.msra.mxu0 0
    %1663 = vmatprep.subr.bf16.mxu0 0
    %1664 = vmatpush1.bf16.msra.mxu0 0
    %1665 = vmatprep.subr.bf16.mxu0 0
    %1666 = vmatpush1.bf16.msra.mxu0 0
    %1667 = vmatprep.subr.bf16.mxu0 0
    %1668 = vmatpush1.bf16.msra.mxu0 0
    %1669 = vmatprep.subr.bf16.mxu0 0
    %1670 = vmatpush1.bf16.msra.mxu0 0
    %1671 = vmatprep.subr.bf16.mxu0 0
    %1672 = vmatpush1.bf16.msra.mxu0 0
    %1673 = vmatprep.subr.bf16.mxu0 0
    %1674 = vmatpush1.bf16.msra.mxu0 0
    %1675 = vmatprep.subr.bf16.mxu0 0
    %1676 = vmatpush1.bf16.msra.mxu0 0
    %1677 = vmatprep.subr.bf16.mxu0 0
    %1678 = vmatpush1.bf16.msra.mxu0 0
    %1679 = vmatprep.mubr.bf16.mxu0 0
    %1680 = vmatmul.mubr.bf16.gmra.mrb[0].mxu0 %v1645
    %v1681 = vpop.f32.mrb[0].mxu0
    %v1682 = vadd.f32 %v1630, %v1681
    %v1683 = vpop.f32.mrb[0].mxu0
    %v1684 = vpop.f32.mrb[0].mxu0
    %v1685 = vadd.f32 %v1630, %v1684
    %v1686 = vpop.f32.mrb[0].mxu0
    %1687 = vdwg.mxu0
    %v1688 = vmax.f32 %v1682, 0.0
    %v1689 = vmax.f32 %v1685, 0.0
    %v1690 = vpack.c.bf16 %v1689, %v1688
    %v1691 = vld [vmem:[#allocation20] sm:$0xf]
    %v1692 = vld [vmem:[#allocation20 + $0x4] sm:$0xf]
    %v1693 = vld [vmem:[#allocation20 + $0x8] sm:$0xf]
    %v1694 = vld [vmem:[#allocation20 + $0xc] sm:$0xf]
    %v1695 = vld [vmem:[#allocation20 + $0x10] sm:$0xf]
    %v1696 = vld [vmem:[#allocation20 + $0x14] sm:$0xf]
    %v1697 = vld [vmem:[#allocation20 + $0x18] sm:$0xf]
    %v1698 = vld [vmem:[#allocation20 + $0x1c] sm:$0xf]
    %v1699 = vld [vmem:[#allocation22] sm:$0x1]
    %v1701 = vlaneseq
    %v1702 = vshrl.u32 %v1701, 7
    %v1703 = vsub.s32 0, %v1702
    %v1704 = vrot.slane %v1699, %v1703
    %v1714 = vunpack.c.l.b16 %v1691
    %v1715 = vunpack.c.l.b16 %v1692
    %v1716 = vunpack.c.l.b16 %v1693
    %v1717 = vunpack.c.l.b16 %v1694
    %v1718 = vunpack.c.l.b16 %v1695
    %v1719 = vunpack.c.l.b16 %v1696
    %v1720 = vunpack.c.l.b16 %v1697
    %v1721 = vunpack.c.l.b16 %v1698
    %v1722 = vpack.c.b16 %v1715, %v1714
    %v1723 = vpack.c.b16 %v1717, %v1716
    %v1724 = vpack.c.b16 %v1719, %v1718
    %v1725 = vpack.c.b16 %v1721, %v1720
    %vm1730 = vcmask 523264
    %v1732 = vsel %vm1730, %v1690, 0
    %1734 = vmatprep.subr.bf16.mxu0 0
    %1735 = vmatpush1.bf16.msra.mxu0 %v1722
    %1736 = vmatprep.subr.bf16.mxu0 0
    %1737 = vmatpush1.bf16.msra.mxu0 %v1723
    %1738 = vmatprep.subr.bf16.mxu0 0
    %1739 = vmatpush1.bf16.msra.mxu0 %v1724
    %1740 = vmatprep.subr.bf16.mxu0 0
    %1741 = vmatpush1.bf16.msra.mxu0 %v1725
    %1742 = vmatprep.subr.bf16.mxu0 0
    %1743 = vmatpush1.bf16.msra.mxu0 0
    %1744 = vmatprep.subr.bf16.mxu0 0
    %1745 = vmatpush1.bf16.msra.mxu0 0
    %1746 = vmatprep.subr.bf16.mxu0 0
    %1747 = vmatpush1.bf16.msra.mxu0 0
    %1748 = vmatprep.subr.bf16.mxu0 0
    %1749 = vmatpush1.bf16.msra.mxu0 0
    %1750 = vmatprep.subr.bf16.mxu0 0
    %1751 = vmatpush1.bf16.msra.mxu0 0
    %1752 = vmatprep.subr.bf16.mxu0 0
    %1753 = vmatpush1.bf16.msra.mxu0 0
    %1754 = vmatprep.subr.bf16.mxu0 0
    %1755 = vmatpush1.bf16.msra.mxu0 0
    %1756 = vmatprep.subr.bf16.mxu0 0
    %1757 = vmatpush1.bf16.msra.mxu0 0
    %1758 = vmatprep.subr.bf16.mxu0 0
    %1759 = vmatpush1.bf16.msra.mxu0 0
    %1760 = vmatprep.subr.bf16.mxu0 0
    %1761 = vmatpush1.bf16.msra.mxu0 0
    %1762 = vmatprep.subr.bf16.mxu0 0
    %1763 = vmatpush1.bf16.msra.mxu0 0
    %1764 = vmatprep.subr.bf16.mxu0 0
    %1765 = vmatpush1.bf16.msra.mxu0 0
    %1766 = vmatprep.mubr.bf16.mxu0 0
    %1767 = vmatmul.mubr.bf16.gmra.mrb[0].mxu0 %v1732
    %v1768 = vpop.f32.mrb[0].mxu0
    %v1769 = vadd.f32 %v1704, %v1768
    %v1770 = vpop.f32.mrb[0].mxu0
    %v1771 = vpop.f32.mrb[0].mxu0
    %v1772 = vadd.f32 %v1704, %v1771
    %v1773 = vpop.f32.mrb[0].mxu0
    %1774 = vdwg.mxu0
    %v1775 = vadd.f32 %v1618, %v1769
    %v1776 = vadd.f32 %v1619, %v1772
    %v1777 = vsel %vm297, %v1775, 0.0
    %1778 = vadd.xlane.f32.xlu0 %v1777
    %v1779 = vpop.xlane.xlu0 %1778
    %v1780 = vsel %vm297, %v1776, 0.0
    %1781 = vadd.xlane.f32.xlu0 %v1780
    %v1782 = vpop.xlane.xlu0 %1781
    %v1783 = vmul.f32 %v1779, %v1581
    %v1784 = vmul.f32 %v1782, %v1581
    %v1785 = vsub.f32 %v1775, %v1783
    %v1786 = vsub.f32 %v1776, %v1784
    %v1787 = vmul.f32 %v1785, %v1785
    %v1788 = vmul.f32 %v1786, %v1786
    %v1789 = vsel %vm297, %v1787, 0.0
    %1790 = vadd.xlane.f32.xlu0 %v1789
    %v1791 = vpop.xlane.xlu0 %1790
    %v1792 = vsel %vm297, %v1788, 0.0
    %1793 = vadd.xlane.f32.xlu0 %v1792
    %v1794 = vpop.xlane.xlu0 %1793
    %v1795 = vmul.f32 %v1791, %v1581
    %v1796 = vmul.f32 %v1794, %v1581
    %v1797 = vadd.f32 %v1795, 1e-05
    %v1798 = vadd.f32 %v1796, 1e-05
    %v1799 = vrsqrt.pop %v1797
    %v1800 = vrsqrt.pop %v1798
    %v1801 = vmul.f32 %v1785, %v1799
    %v1802 = vmul.f32 %v1786, %v1800
    %v1803 = vld [vmem:[#allocation26] sm:$0x1]
    %v1805 = vlaneseq
    %v1806 = vshrl.u32 %v1805, 7
    %v1807 = vsub.s32 0, %v1806
    %v1808 = vrot.slane %v1803, %v1807
    %v1810 = vmul.f32 %v1801, %v1808
    %v1811 = vmul.f32 %v1802, %v1808
    %v1812 = vld [vmem:[#allocation28] sm:$0x1]
    %v1814 = vlaneseq
    %v1815 = vshrl.u32 %v1814, 7
    %v1816 = vsub.s32 0, %v1815
    %v1817 = vrot.slane %v1812, %v1816
    %v1819 = vadd.f32 %v1810, %v1817
    %v1820 = vadd.f32 %v1811, %v1817
    %1821 = vst.msk [vmem:[#allocation29] sm:$0xff] %vm297, %v1819
    %1822 = vst.msk [vmem:[#allocation29 + $0x8] sm:$0xff] %vm297, %v1820
    // Predicated region
    $region138: #{tpu_custom_call.1} parent=1 // pred_check
      _
    $region139: #{tpu_custom_call.1} parent=1 // pred_check_branch
      %1824 = sbr.rel (0) target = $region141
    $region140: #{tpu_custom_call.1} parent=1 // pred_region
      %s1826 = ssub.s32 256, 256
      %1827 = vsyncadd [#allocation4], %s1826
      %s1828 = sshll.u32 [#allocation29], 4
      %s1829 = int_to_ptr.vmem [resolvable:$true] %s1828
      %1834 = dma.vmem_to_hbm [thread:$0]  %s1829, 256, %s17, [#allocation4], 128, 128, 8
    $region141: #{tpu_custom_call.1} parent=1 // pred_fallthru
      _
    // Predicated region
    $region142: #{tpu_custom_call.1} parent=1 // pred_check
      _
    $region143: #{tpu_custom_call.1} parent=1 // pred_check_branch
      %1836 = sbr.rel (0) target = $region145
    $region144: #{tpu_custom_call.1} parent=1 // pred_region
      %s1838 = ssub.s32 256, 256
      %1839 = vsyncadd [#allocation31], %s1838
      %s1840 = sshll.u32 [#allocation30], 4
      %s1841 = int_to_ptr.vmem [resolvable:$true] %s1840
      %1846 = dma.vmem_to_hbm [thread:$0]  %s1841, 256, %s18, [#allocation31], 128, 128, 8
    $region145: #{tpu_custom_call.1} parent=1 // pred_fallthru
      _
    // Predicated region
    $region146: #{tpu_custom_call.1} parent=1 // pred_check
      _
    $region147: #{tpu_custom_call.1} parent=1 // pred_check_branch
      %1848 = sbr.rel (0) target = $region149
    $region148: #{tpu_custom_call.1} parent=1 // pred_region
      %1849 = dma.done [#allocation4], 256
    $region149: #{tpu_custom_call.1} parent=1 // pred_fallthru
      _
    // Predicated region
    $region150: #{tpu_custom_call.1} parent=1 // pred_check
      _
    $region151: #{tpu_custom_call.1} parent=1 // pred_check_branch
      %1851 = sbr.rel (0) target = $region153
    $region152: #{tpu_custom_call.1} parent=1 // pred_region
      %1852 = dma.done [#allocation31], 256
    $region153: #{tpu_custom_call.1} parent=1 // pred_fallthru
      _
    %1853 = vsyncpa [#allocation3], 1
    %1854 = vsyncpa [#allocation6], 1
    %1855 = vsyncpa [#allocation9], 1
    %1856 = vsyncpa [#allocation12], 1
    %1857 = vsyncpa [#allocation15], 1
    %1858 = vsyncpa [#allocation18], 1
    %1859 = vsyncpa [#allocation21], 1
    %1860 = vsyncpa [#allocation24], 1
    %1861 = vsyncpa [#allocation27], 1
    %1862 = vsyncpa [#allocation4], 1
    %1863 = vsyncpa [#allocation31], 1

</llo_original>
